<compile_context>
chip_gen: v6e
topology: v6e:2x2x1
jax: 0.10.0
libtpu: 0.0.40
codegen_flags: <defaults>
</compile_context>

<pallas_src>
import functools

import jax
import jax.numpy as jnp
import numpy as np
from jax.experimental import pallas as pl
from jax.experimental.pallas import tpu as pltpu

EPS = 1e-5


def resnet_block_kernel(x_ref, mt_ref, mb_ref, w1b_ref, w2b_ref, pad_ref,
                        grp1_ref, grp2_ref, gam1_ref, bet1_ref,
                        gam2_ref, bet2_ref, out_ref, *, count):
    """Lane-dense ResNet block.

    x_ref    : (N*H, W*Cin)       lane-dense input, f32
    mt_ref   : (N*H, 1)           0 on first row of each image, else 1 (f32)
    mb_ref   : (N*H, 1)           0 on last  row of each image, else 1 (f32)
    w1b_ref  : (3, W*Cin,  W*Chid) per-dy banded conv1 weights, bf16
    w2b_ref  : (3, W*Chid, W*Cout) per-dy banded conv2 weights, bf16
    pad_ref  : (W*Cin, W*Cout)    0/1 channel-pad matrix (identity), f32
    grp*_ref : (W*C, W*C)         0/1 channel-group sum matrices (BN pooling)
    gam*/bet*: (1, W*C)           gamma/beta broadcast lane-dense
    out_ref  : (N*H, W*Cout)
    """
    M2 = out_ref.shape[0]          # N * H rows on the sublane axis
    inv_cnt = 1.0 / count          # 1 / (N*H*W)

    x = x_ref[...]                 # f32
    mt = mt_ref[...]
    mb = mb_ref[...]

    # ---------------- Conv1: 3 per-dy banded bf16 matmuls (f32 acc) ----------
    # (conv bias omitted: a per-channel constant is cancelled exactly by the
    #  training-mode BatchNorm mean subtraction)
    x_prev = pltpu.roll(x, shift=1, axis=0) * mt            # H halo, masked (f32)
    x_next = pltpu.roll(x, shift=M2 - 1, axis=0) * mb
    acc1 = (jnp.dot(x_prev.astype(jnp.bfloat16), w1b_ref[0],
                    preferred_element_type=jnp.float32)
            + jnp.dot(x.astype(jnp.bfloat16), w1b_ref[1],
                      preferred_element_type=jnp.float32)
            + jnp.dot(x_next.astype(jnp.bfloat16), w1b_ref[2],
                      preferred_element_type=jnp.float32))

    # ---------------- BN1: sublane reduce FIRST, then tiny group-sum matmuls -
    row1 = jnp.sum(acc1, axis=0, keepdims=True)              # (1, W*Chid), XLU
    sq1 = jnp.sum(acc1 * acc1, axis=0, keepdims=True)
    mean1 = jnp.dot(row1, grp1_ref[...],
                    preferred_element_type=jnp.float32) * inv_cnt
    var1 = jnp.dot(sq1, grp1_ref[...],
                   preferred_element_type=jnp.float32) * inv_cnt - mean1 * mean1
    a1 = gam1_ref[...] * jax.lax.rsqrt(var1 + EPS)
    c1 = bet1_ref[...] - mean1 * a1
    h = jnp.maximum(acc1 * a1 + c1, 0.0)                      # f32 (M2, W*Chid)

    # ---------------- Conv2: 3 per-dy banded bf16 matmuls (f32 acc) ----------
    h_prev = pltpu.roll(h, shift=1, axis=0) * mt
    h_next = pltpu.roll(h, shift=M2 - 1, axis=0) * mb
    acc2 = (jnp.dot(h_prev.astype(jnp.bfloat16), w2b_ref[0],
                    preferred_element_type=jnp.float32)
            + jnp.dot(h.astype(jnp.bfloat16), w2b_ref[1],
                      preferred_element_type=jnp.float32)
            + jnp.dot(h_next.astype(jnp.bfloat16), w2b_ref[2],
                      preferred_element_type=jnp.float32))

    # ---------------- BN2 ------------------------------------------------------
    row2 = jnp.sum(acc2, axis=0, keepdims=True)
    sq2 = jnp.sum(acc2 * acc2, axis=0, keepdims=True)
    mean2 = jnp.dot(row2, grp2_ref[...],
                    preferred_element_type=jnp.float32) * inv_cnt
    var2 = jnp.dot(sq2, grp2_ref[...],
                   preferred_element_type=jnp.float32) * inv_cnt - mean2 * mean2
    a2 = gam2_ref[...] * jax.lax.rsqrt(var2 + EPS)
    c2 = bet2_ref[...] - mean2 * a2

    # ------------- identity channel pad (exact 0/1 f32 matmul) + ReLU --------
    ident = jnp.dot(x, pad_ref[...], preferred_element_type=jnp.float32)
    out_ref[...] = jnp.maximum(acc2 * a2 + c2 + ident, 0.0)   # unmasked vst


# ---------------------------- wrapper helpers --------------------------------
def _full_spec(shape):
    return pl.BlockSpec(shape, lambda i, n=len(shape): (0,) * n)


def _conv_band(w, W):
    """(3, W*Ci, W*Co): per-dy banded weights.  Row = wi*Ci + ci, col = wc*Co + co,
    value = w[dy, wi-wc+1, ci, co] inside the 3-tap band; the W-direction zero
    padding is encoded by the band running off the [0, W) range."""
    Ci, Co = w.shape[2], w.shape[3]
    wi = np.arange(W)[:, None, None]
    dx = np.arange(3)[None, :, None]
    wc = np.arange(W)[None, None, :]
    S = jnp.asarray((wi == wc + dx - 1).astype(np.float32))          # (W, 3, W)
    B = (S[None, :, :, None, :, None] *
         w[:, None, :, :, None, :]).sum(axis=2)                      # (3,W,Ci,W,Co)
    return B.reshape(3, W * Ci, W * Co)


def _group_sum_matrix(C, W):
    """(W*C, W*C) 0/1 matrix: right-multiplying sums each channel over the W
    groups and broadcasts the sum back to every group (keeps BN stats lane-dense)."""
    return jnp.asarray(np.kron(np.ones((W, W), np.float32),
                               np.eye(C, dtype=np.float32)))


def _channel_pad_matrix(Cin, Cout, W):
    """(W*Cin, W*Cout) 0/1 matrix: maps lane w*Cin+c -> lane w*Cout+c (channel pad)."""
    return jnp.asarray(np.kron(np.eye(W, dtype=np.float32),
                               np.eye(Cin, Cout, dtype=np.float32)))


def resnet_block_forward(x_nchw, params):
    """Pallas forward. x_nchw: (N, Cin, H, W) f32. Returns (N, Cout, H, W)."""
    w1, b1, g1, bt1, w2, b2, g2, bt2 = params
    # b1 / b2 are intentionally unused: training-mode BN cancels conv biases.
    N, Cin, H, W = x_nchw.shape
    Chid, Cout = w1.shape[-1], w2.shape[-1]
    assert Cout >= Cin, "only channel-padding residual (out >= in) is supported"

    x = jnp.transpose(x_nchw, (0, 2, 3, 1)).astype(jnp.float32)      # NHWC
    x_ld = x.reshape(N * H, W * Cin)                                 # lane-dense, 1x read

    # Per-image boundary row masks (precomputed; no in-kernel iota/%H).
    rows = np.arange(N * H)
    mt = jnp.asarray((rows % H != 0).astype(np.float32).reshape(-1, 1))
    mb = jnp.asarray((rows % H != H - 1).astype(np.float32).reshape(-1, 1))

    # Banded conv weights, pre-cast to bf16 (MXU operands); exact band placement.
    w1b = _conv_band(w1.astype(jnp.float32), W).astype(jnp.bfloat16)
    w2b = _conv_band(w2.astype(jnp.float32), W).astype(jnp.bfloat16)
    pad_mat = _channel_pad_matrix(Cin, Cout, W)
    grp1 = _group_sum_matrix(Chid, W)
    grp2 = _group_sum_matrix(Cout, W)

    gam1 = jnp.tile(g1.astype(jnp.float32), W).reshape(1, W * Chid)
    bet1 = jnp.tile(bt1.astype(jnp.float32), W).reshape(1, W * Chid)
    gam2 = jnp.tile(g2.astype(jnp.float32), W).reshape(1, W * Cout)
    bet2 = jnp.tile(bt2.astype(jnp.float32), W).reshape(1, W * Cout)

    args = (x_ld, mt, mb, w1b, w2b, pad_mat, grp1, grp2, gam1, bet1, gam2, bet2)

    kernel = functools.partial(resnet_block_kernel, count=float(N * H * W))

    out_ld = pl.pallas_call(
        kernel,
        out_shape=jax.ShapeDtypeStruct((N * H, W * Cout), jnp.float32),
        grid=(1,),
        in_specs=[_full_spec(a.shape) for a in args],
        out_specs=_full_spec((N * H, W * Cout)),
        compiler_params=pltpu.CompilerParams(
            dimension_semantics=("arbitrary",)),
    )(*args)

    out_nhwc = out_ld.reshape(N, H, W, Cout)
    return jnp.transpose(out_nhwc, (0, 3, 1, 2))                     # back to NCHW


def ref_forward(x_nchw, params):
    """Pure-JAX reference of the PyTorch module's forward (training-mode BN)."""
    w1, b1, g1, bt1, w2, b2, g2, bt2 = params
    x = jnp.transpose(x_nchw, (0, 2, 3, 1)).astype(jnp.float32)

    def conv3x3(inp, w, b):
        y = jax.lax.conv_general_dilated(
            inp, w, window_strides=(1, 1), padding="SAME",
            dimension_numbers=("NHWC", "HWIO", "NHWC"))
        return y + b

    def bn(y, g, bt):
        m = jnp.mean(y, axis=(0, 1, 2), keepdims=True)
        v = jnp.mean((y - m) ** 2, axis=(0, 1, 2), keepdims=True)
        return (y - m) * jax.lax.rsqrt(v + EPS) * g + bt

    h = jax.nn.relu(bn(conv3x3(x, w1, b1), g1, bt1))
    o = bn(conv3x3(h, w2, b2), g2, bt2)
    cin, cout = x.shape[-1], o.shape[-1]
    ident = jnp.pad(x, ((0, 0), (0, 0), (0, 0), (0, cout - cin)))
    o = jax.nn.relu(o + ident)
    return jnp.transpose(o, (0, 3, 1, 2))


if __name__ == "__main__":
    # ResNetBlock(in_channels=4, out_channels=8, hidden_dim=8), x: (2, 4, 16, 16)
    in_ch, out_ch, hidden = 4, 8, 8
    N, H, W = 2, 16, 16

    key = jax.random.PRNGKey(0)
    ks = jax.random.split(key, 9)
    x = jax.random.normal(ks[0], (N, in_ch, H, W), jnp.float32)

    # Deterministic synthetic parameters (HWIO conv weights).
    w1 = 0.1 * jax.random.normal(ks[1], (3, 3, in_ch, hidden), jnp.float32)
    b1 = 0.1 * jax.random.normal(ks[2], (hidden,), jnp.float32)
    g1 = 1.0 + 0.1 * jax.random.normal(ks[3], (hidden,), jnp.float32)
    bt1 = 0.1 * jax.random.normal(ks[4], (hidden,), jnp.float32)
    w2 = 0.1 * jax.random.normal(ks[5], (3, 3, hidden, out_ch), jnp.float32)
    b2 = 0.1 * jax.random.normal(ks[6], (out_ch,), jnp.float32)
    g2 = 1.0 + 0.1 * jax.random.normal(ks[7], (out_ch,), jnp.float32)
    bt2 = 0.1 * jax.random.normal(ks[8], (out_ch,), jnp.float32)
    params = (w1, b1, g1, bt1, w2, b2, g2, bt2)

    out = jax.block_until_ready(resnet_block_forward(x, params))
    ref = jax.block_until_ready(ref_forward(x, params))

    assert out.shape == (N, out_ch, H, W), out.shape
    # bf16 MXU operands (f32 accumulation) -> slightly looser tolerance than f32.
    np.testing.assert_allclose(np.asarray(out), np.asarray(ref),
                               rtol=2e-2, atol=2e-2)
    print("KERNEL_OK")
</pallas_src>

<mosaic_0001>
module attributes {stable_mosaic.version = 11 : i64} {
  func.func @resnet_block_kernel(%arg0: i32, %arg1: memref<32x64xf32, #tpu.memory_space<vmem>>, %arg2: memref<32x1xf32, #tpu.memory_space<vmem>>, %arg3: memref<32x1xf32, #tpu.memory_space<vmem>>, %arg4: memref<3x64x128xbf16, #tpu.memory_space<vmem>>, %arg5: memref<3x128x128xbf16, #tpu.memory_space<vmem>>, %arg6: memref<64x128xf32, #tpu.memory_space<vmem>>, %arg7: memref<128x128xf32, #tpu.memory_space<vmem>>, %arg8: memref<128x128xf32, #tpu.memory_space<vmem>>, %arg9: memref<1x128xf32, #tpu.memory_space<vmem>>, %arg10: memref<1x128xf32, #tpu.memory_space<vmem>>, %arg11: memref<1x128xf32, #tpu.memory_space<vmem>>, %arg12: memref<1x128xf32, #tpu.memory_space<vmem>>, %arg13: memref<32x128xf32, #tpu.memory_space<vmem>>) attributes {dimension_semantics = [#tpu.dimension_semantics<arbitrary>], iteration_bounds = array<i64: 1>, scalar_prefetch = 0 : i64, scratch_operands = 0 : i64, tpu.core_type = #tpu.core_type<tc>, window_params = [{pipeline_mode = #tpu.pipeline_mode<synchronous>, transform_indices = @transform_0, window_bounds = array<i64: 32, 64>}, {pipeline_mode = #tpu.pipeline_mode<synchronous>, transform_indices = @transform_1, window_bounds = array<i64: 32, 1>}, {pipeline_mode = #tpu.pipeline_mode<synchronous>, transform_indices = @transform_2, window_bounds = array<i64: 32, 1>}, {pipeline_mode = #tpu.pipeline_mode<synchronous>, transform_indices = @transform_3, window_bounds = array<i64: 3, 64, 128>}, {pipeline_mode = #tpu.pipeline_mode<synchronous>, transform_indices = @transform_4, window_bounds = array<i64: 3, 128, 128>}, {pipeline_mode = #tpu.pipeline_mode<synchronous>, transform_indices = @transform_5, window_bounds = array<i64: 64, 128>}, {pipeline_mode = #tpu.pipeline_mode<synchronous>, transform_indices = @transform_6, window_bounds = array<i64: 128, 128>}, {pipeline_mode = #tpu.pipeline_mode<synchronous>, transform_indices = @transform_7, window_bounds = array<i64: 128, 128>}, {pipeline_mode = #tpu.pipeline_mode<synchronous>, transform_indices = @transform_8, window_bounds = array<i64: 1, 128>}, {pipeline_mode = #tpu.pipeline_mode<synchronous>, transform_indices = @transform_9, window_bounds = array<i64: 1, 128>}, {pipeline_mode = #tpu.pipeline_mode<synchronous>, transform_indices = @transform_10, window_bounds = array<i64: 1, 128>}, {pipeline_mode = #tpu.pipeline_mode<synchronous>, transform_indices = @transform_11, window_bounds = array<i64: 1, 128>}, {pipeline_mode = #tpu.pipeline_mode<synchronous>, transform_indices = @transform_12, window_bounds = array<i64: 32, 128>}]} {
    %c0 = arith.constant 0 : index
    %c0_0 = arith.constant 0 : index
    %0 = vector.load %arg1[%c0, %c0_0] : memref<32x64xf32, #tpu.memory_space<vmem>>, vector<32x64xf32>
    %c0_1 = arith.constant 0 : index
    %c0_2 = arith.constant 0 : index
    %1 = vector.load %arg2[%c0_1, %c0_2] : memref<32x1xf32, #tpu.memory_space<vmem>>, vector<32x1xf32>
    %c0_3 = arith.constant 0 : index
    %c0_4 = arith.constant 0 : index
    %2 = vector.load %arg3[%c0_3, %c0_4] : memref<32x1xf32, #tpu.memory_space<vmem>>, vector<32x1xf32>
    %c1_i32 = arith.constant 1 : i32
    %3 = tpu.dynamic_rotate %0 by %c1_i32 dim 0 : vector<32x64xf32>, i32 -> vector<32x64xf32>
    %4 = vector.broadcast %1 : vector<32x1xf32> to vector<32x64xf32>
    %5 = arith.mulf %3, %4 : vector<32x64xf32>
    %c31_i32 = arith.constant 31 : i32
    %6 = tpu.dynamic_rotate %0 by %c31_i32 dim 0 : vector<32x64xf32>, i32 -> vector<32x64xf32>
    %7 = vector.broadcast %2 : vector<32x1xf32> to vector<32x64xf32>
    %8 = arith.mulf %6, %7 : vector<32x64xf32>
    %9 = arith.truncf %5 : vector<32x64xf32> to vector<32x64xbf16>
    %c0_5 = arith.constant 0 : index
    %c0_6 = arith.constant 0 : index
    %c0_7 = arith.constant 0 : index
    %10 = vector.load %arg4[%c0_5, %c0_6, %c0_7] : memref<3x64x128xbf16, #tpu.memory_space<vmem>>, vector<1x64x128xbf16>
    %11 = vector.shape_cast %10 : vector<1x64x128xbf16> to vector<64x128xbf16>
    %cst = arith.constant dense<0.000000e+00> : vector<32x128xf32>
    %12 = tpu.matmul %9, %11, %cst {dimension_numbers = #tpu.dot_dimension_numbers<[1], [0], [0], [1], [0, 0, 1, 1], [], []>} : vector<32x64xbf16>, vector<64x128xbf16>, vector<32x128xf32> -> vector<32x128xf32>
    %13 = arith.truncf %0 : vector<32x64xf32> to vector<32x64xbf16>
    %c1 = arith.constant 1 : index
    %c0_8 = arith.constant 0 : index
    %c0_9 = arith.constant 0 : index
    %14 = vector.load %arg4[%c1, %c0_8, %c0_9] : memref<3x64x128xbf16, #tpu.memory_space<vmem>>, vector<1x64x128xbf16>
    %15 = vector.shape_cast %14 : vector<1x64x128xbf16> to vector<64x128xbf16>
    %cst_10 = arith.constant dense<0.000000e+00> : vector<32x128xf32>
    %16 = tpu.matmul %13, %15, %cst_10 {dimension_numbers = #tpu.dot_dimension_numbers<[1], [0], [0], [1], [0, 0, 1, 1], [], []>} : vector<32x64xbf16>, vector<64x128xbf16>, vector<32x128xf32> -> vector<32x128xf32>
    %17 = arith.addf %12, %16 : vector<32x128xf32>
    %18 = arith.truncf %8 : vector<32x64xf32> to vector<32x64xbf16>
    %c2 = arith.constant 2 : index
    %c0_11 = arith.constant 0 : index
    %c0_12 = arith.constant 0 : index
    %19 = vector.load %arg4[%c2, %c0_11, %c0_12] : memref<3x64x128xbf16, #tpu.memory_space<vmem>>, vector<1x64x128xbf16>
    %20 = vector.shape_cast %19 : vector<1x64x128xbf16> to vector<64x128xbf16>
    %cst_13 = arith.constant dense<0.000000e+00> : vector<32x128xf32>
    %21 = tpu.matmul %18, %20, %cst_13 {dimension_numbers = #tpu.dot_dimension_numbers<[1], [0], [0], [1], [0, 0, 1, 1], [], []>} : vector<32x64xbf16>, vector<64x128xbf16>, vector<32x128xf32> -> vector<32x128xf32>
    %22 = arith.addf %17, %21 : vector<32x128xf32>
    %cst_14 = arith.constant dense<0.000000e+00> : vector<128xf32>
    %23 = vector.multi_reduction <add>, %22, %cst_14 [0] : vector<32x128xf32> to vector<128xf32>
    %24 = vector.shape_cast %23 : vector<128xf32> to vector<1x128xf32>
    %25 = arith.mulf %22, %22 : vector<32x128xf32>
    %cst_15 = arith.constant dense<0.000000e+00> : vector<128xf32>
    %26 = vector.multi_reduction <add>, %25, %cst_15 [0] : vector<32x128xf32> to vector<128xf32>
    %27 = vector.shape_cast %26 : vector<128xf32> to vector<1x128xf32>
    %c0_16 = arith.constant 0 : index
    %c0_17 = arith.constant 0 : index
    %28 = vector.load %arg7[%c0_16, %c0_17] : memref<128x128xf32, #tpu.memory_space<vmem>>, vector<128x128xf32>
    %cst_18 = arith.constant dense<0.000000e+00> : vector<1x128xf32>
    %29 = tpu.matmul %24, %28, %cst_18 {dimension_numbers = #tpu.dot_dimension_numbers<[1], [0], [0], [1], [0, 0, 1, 1], [], []>} : vector<1x128xf32>, vector<128x128xf32>, vector<1x128xf32> -> vector<1x128xf32>
    %cst_19 = arith.constant 0.001953125 : f32
    %30 = vector.broadcast %cst_19 : f32 to vector<1x128xf32>
    %31 = arith.mulf %29, %30 : vector<1x128xf32>
    %c0_20 = arith.constant 0 : index
    %c0_21 = arith.constant 0 : index
    %32 = vector.load %arg7[%c0_20, %c0_21] : memref<128x128xf32, #tpu.memory_space<vmem>>, vector<128x128xf32>
    %cst_22 = arith.constant dense<0.000000e+00> : vector<1x128xf32>
    %33 = tpu.matmul %27, %32, %cst_22 {dimension_numbers = #tpu.dot_dimension_numbers<[1], [0], [0], [1], [0, 0, 1, 1], [], []>} : vector<1x128xf32>, vector<128x128xf32>, vector<1x128xf32> -> vector<1x128xf32>
    %cst_23 = arith.constant 0.001953125 : f32
    %34 = vector.broadcast %cst_23 : f32 to vector<1x128xf32>
    %35 = arith.mulf %33, %34 : vector<1x128xf32>
    %36 = arith.mulf %31, %31 : vector<1x128xf32>
    %37 = arith.subf %35, %36 : vector<1x128xf32>
    %c0_24 = arith.constant 0 : index
    %c0_25 = arith.constant 0 : index
    %38 = vector.load %arg9[%c0_24, %c0_25] : memref<1x128xf32, #tpu.memory_space<vmem>>, vector<1x128xf32>
    %cst_26 = arith.constant 9.99999974E-6 : f32
    %39 = vector.broadcast %cst_26 : f32 to vector<1x128xf32>
    %40 = arith.addf %37, %39 : vector<1x128xf32>
    %41 = math.rsqrt %40 : vector<1x128xf32>
    %42 = arith.mulf %38, %41 : vector<1x128xf32>
    %c0_27 = arith.constant 0 : index
    %c0_28 = arith.constant 0 : index
    %43 = vector.load %arg10[%c0_27, %c0_28] : memref<1x128xf32, #tpu.memory_space<vmem>>, vector<1x128xf32>
    %44 = arith.mulf %31, %42 : vector<1x128xf32>
    %45 = arith.subf %43, %44 : vector<1x128xf32>
    %46 = vector.broadcast %42 : vector<1x128xf32> to vector<32x128xf32>
    %47 = arith.mulf %22, %46 : vector<32x128xf32>
    %48 = vector.broadcast %45 : vector<1x128xf32> to vector<32x128xf32>
    %49 = arith.addf %47, %48 : vector<32x128xf32>
    %cst_29 = arith.constant 0.000000e+00 : f32
    %50 = vector.broadcast %cst_29 : f32 to vector<32x128xf32>
    %51 = arith.maximumf %49, %50 : vector<32x128xf32>
    %c1_i32_30 = arith.constant 1 : i32
    %52 = tpu.dynamic_rotate %51 by %c1_i32_30 dim 0 : vector<32x128xf32>, i32 -> vector<32x128xf32>
    %53 = vector.broadcast %1 : vector<32x1xf32> to vector<32x128xf32>
    %54 = arith.mulf %52, %53 : vector<32x128xf32>
    %c31_i32_31 = arith.constant 31 : i32
    %55 = tpu.dynamic_rotate %51 by %c31_i32_31 dim 0 : vector<32x128xf32>, i32 -> vector<32x128xf32>
    %56 = vector.broadcast %2 : vector<32x1xf32> to vector<32x128xf32>
    %57 = arith.mulf %55, %56 : vector<32x128xf32>
    %58 = arith.truncf %54 : vector<32x128xf32> to vector<32x128xbf16>
    %c0_32 = arith.constant 0 : index
    %c0_33 = arith.constant 0 : index
    %c0_34 = arith.constant 0 : index
    %59 = vector.load %arg5[%c0_32, %c0_33, %c0_34] : memref<3x128x128xbf16, #tpu.memory_space<vmem>>, vector<1x128x128xbf16>
    %60 = vector.shape_cast %59 : vector<1x128x128xbf16> to vector<128x128xbf16>
    %cst_35 = arith.constant dense<0.000000e+00> : vector<32x128xf32>
    %61 = tpu.matmul %58, %60, %cst_35 {dimension_numbers = #tpu.dot_dimension_numbers<[1], [0], [0], [1], [0, 0, 1, 1], [], []>} : vector<32x128xbf16>, vector<128x128xbf16>, vector<32x128xf32> -> vector<32x128xf32>
    %62 = arith.truncf %51 : vector<32x128xf32> to vector<32x128xbf16>
    %c1_36 = arith.constant 1 : index
    %c0_37 = arith.constant 0 : index
    %c0_38 = arith.constant 0 : index
    %63 = vector.load %arg5[%c1_36, %c0_37, %c0_38] : memref<3x128x128xbf16, #tpu.memory_space<vmem>>, vector<1x128x128xbf16>
    %64 = vector.shape_cast %63 : vector<1x128x128xbf16> to vector<128x128xbf16>
    %cst_39 = arith.constant dense<0.000000e+00> : vector<32x128xf32>
    %65 = tpu.matmul %62, %64, %cst_39 {dimension_numbers = #tpu.dot_dimension_numbers<[1], [0], [0], [1], [0, 0, 1, 1], [], []>} : vector<32x128xbf16>, vector<128x128xbf16>, vector<32x128xf32> -> vector<32x128xf32>
    %66 = arith.addf %61, %65 : vector<32x128xf32>
    %67 = arith.truncf %57 : vector<32x128xf32> to vector<32x128xbf16>
    %c2_40 = arith.constant 2 : index
    %c0_41 = arith.constant 0 : index
    %c0_42 = arith.constant 0 : index
    %68 = vector.load %arg5[%c2_40, %c0_41, %c0_42] : memref<3x128x128xbf16, #tpu.memory_space<vmem>>, vector<1x128x128xbf16>
    %69 = vector.shape_cast %68 : vector<1x128x128xbf16> to vector<128x128xbf16>
    %cst_43 = arith.constant dense<0.000000e+00> : vector<32x128xf32>
    %70 = tpu.matmul %67, %69, %cst_43 {dimension_numbers = #tpu.dot_dimension_numbers<[1], [0], [0], [1], [0, 0, 1, 1], [], []>} : vector<32x128xbf16>, vector<128x128xbf16>, vector<32x128xf32> -> vector<32x128xf32>
    %71 = arith.addf %66, %70 : vector<32x128xf32>
    %cst_44 = arith.constant dense<0.000000e+00> : vector<128xf32>
    %72 = vector.multi_reduction <add>, %71, %cst_44 [0] : vector<32x128xf32> to vector<128xf32>
    %73 = vector.shape_cast %72 : vector<128xf32> to vector<1x128xf32>
    %74 = arith.mulf %71, %71 : vector<32x128xf32>
    %cst_45 = arith.constant dense<0.000000e+00> : vector<128xf32>
    %75 = vector.multi_reduction <add>, %74, %cst_45 [0] : vector<32x128xf32> to vector<128xf32>
    %76 = vector.shape_cast %75 : vector<128xf32> to vector<1x128xf32>
    %c0_46 = arith.constant 0 : index
    %c0_47 = arith.constant 0 : index
    %77 = vector.load %arg8[%c0_46, %c0_47] : memref<128x128xf32, #tpu.memory_space<vmem>>, vector<128x128xf32>
    %cst_48 = arith.constant dense<0.000000e+00> : vector<1x128xf32>
    %78 = tpu.matmul %73, %77, %cst_48 {dimension_numbers = #tpu.dot_dimension_numbers<[1], [0], [0], [1], [0, 0, 1, 1], [], []>} : vector<1x128xf32>, vector<128x128xf32>, vector<1x128xf32> -> vector<1x128xf32>
    %cst_49 = arith.constant 0.001953125 : f32
    %79 = vector.broadcast %cst_49 : f32 to vector<1x128xf32>
    %80 = arith.mulf %78, %79 : vector<1x128xf32>
    %c0_50 = arith.constant 0 : index
    %c0_51 = arith.constant 0 : index
    %81 = vector.load %arg8[%c0_50, %c0_51] : memref<128x128xf32, #tpu.memory_space<vmem>>, vector<128x128xf32>
    %cst_52 = arith.constant dense<0.000000e+00> : vector<1x128xf32>
    %82 = tpu.matmul %76, %81, %cst_52 {dimension_numbers = #tpu.dot_dimension_numbers<[1], [0], [0], [1], [0, 0, 1, 1], [], []>} : vector<1x128xf32>, vector<128x128xf32>, vector<1x128xf32> -> vector<1x128xf32>
    %cst_53 = arith.constant 0.001953125 : f32
    %83 = vector.broadcast %cst_53 : f32 to vector<1x128xf32>
    %84 = arith.mulf %82, %83 : vector<1x128xf32>
    %85 = arith.mulf %80, %80 : vector<1x128xf32>
    %86 = arith.subf %84, %85 : vector<1x128xf32>
    %c0_54 = arith.constant 0 : index
    %c0_55 = arith.constant 0 : index
    %87 = vector.load %arg11[%c0_54, %c0_55] : memref<1x128xf32, #tpu.memory_space<vmem>>, vector<1x128xf32>
    %cst_56 = arith.constant 9.99999974E-6 : f32
    %88 = vector.broadcast %cst_56 : f32 to vector<1x128xf32>
    %89 = arith.addf %86, %88 : vector<1x128xf32>
    %90 = math.rsqrt %89 : vector<1x128xf32>
    %91 = arith.mulf %87, %90 : vector<1x128xf32>
    %c0_57 = arith.constant 0 : index
    %c0_58 = arith.constant 0 : index
    %92 = vector.load %arg12[%c0_57, %c0_58] : memref<1x128xf32, #tpu.memory_space<vmem>>, vector<1x128xf32>
    %93 = arith.mulf %80, %91 : vector<1x128xf32>
    %94 = arith.subf %92, %93 : vector<1x128xf32>
    %c0_59 = arith.constant 0 : index
    %c0_60 = arith.constant 0 : index
    %95 = vector.load %arg6[%c0_59, %c0_60] : memref<64x128xf32, #tpu.memory_space<vmem>>, vector<64x128xf32>
    %cst_61 = arith.constant dense<0.000000e+00> : vector<32x128xf32>
    %96 = tpu.matmul %0, %95, %cst_61 {dimension_numbers = #tpu.dot_dimension_numbers<[1], [0], [0], [1], [0, 0, 1, 1], [], []>} : vector<32x64xf32>, vector<64x128xf32>, vector<32x128xf32> -> vector<32x128xf32>
    %97 = vector.broadcast %91 : vector<1x128xf32> to vector<32x128xf32>
    %98 = arith.mulf %71, %97 : vector<32x128xf32>
    %99 = vector.broadcast %94 : vector<1x128xf32> to vector<32x128xf32>
    %100 = arith.addf %98, %99 : vector<32x128xf32>
    %101 = arith.addf %100, %96 : vector<32x128xf32>
    %cst_62 = arith.constant 0.000000e+00 : f32
    %102 = vector.broadcast %cst_62 : f32 to vector<32x128xf32>
    %103 = arith.maximumf %101, %102 : vector<32x128xf32>
    %c0_63 = arith.constant 0 : index
    %c0_64 = arith.constant 0 : index
    %104 = vector.load %arg13[%c0_63, %c0_64] : memref<32x128xf32, #tpu.memory_space<vmem>>, vector<32x128xf32>
    tpu.vector_store %arg13[%c0_63, %c0_64], %103 {strides = array<i32>} : memref<32x128xf32, #tpu.memory_space<vmem>>, vector<32x128xf32>,
    return
  }
  func.func @transform_0(%arg0: i32) -> (i32, i32) {
    %c0_i32 = arith.constant 0 : i32
    %c0_i32_0 = arith.constant 0 : i32
    %c0_i32_1 = arith.constant 0 : i32
    return %c0_i32, %c0_i32_0 : i32, i32
  }
  func.func @transform_1(%arg0: i32) -> (i32, i32) {
    %c0_i32 = arith.constant 0 : i32
    %c0_i32_0 = arith.constant 0 : i32
    %c0_i32_1 = arith.constant 0 : i32
    return %c0_i32, %c0_i32_0 : i32, i32
  }
  func.func @transform_2(%arg0: i32) -> (i32, i32) {
    %c0_i32 = arith.constant 0 : i32
    %c0_i32_0 = arith.constant 0 : i32
    %c0_i32_1 = arith.constant 0 : i32
    return %c0_i32, %c0_i32_0 : i32, i32
  }
  func.func @transform_3(%arg0: i32) -> (i32, i32, i32) {
    %c0_i32 = arith.constant 0 : i32
    %c0_i32_0 = arith.constant 0 : i32
    %c0_i32_1 = arith.constant 0 : i32
    %c0_i32_2 = arith.constant 0 : i32
    return %c0_i32, %c0_i32_0, %c0_i32_1 : i32, i32, i32
  }
  func.func @transform_4(%arg0: i32) -> (i32, i32, i32) {
    %c0_i32 = arith.constant 0 : i32
    %c0_i32_0 = arith.constant 0 : i32
    %c0_i32_1 = arith.constant 0 : i32
    %c0_i32_2 = arith.constant 0 : i32
    return %c0_i32, %c0_i32_0, %c0_i32_1 : i32, i32, i32
  }
  func.func @transform_5(%arg0: i32) -> (i32, i32) {
    %c0_i32 = arith.constant 0 : i32
    %c0_i32_0 = arith.constant 0 : i32
    %c0_i32_1 = arith.constant 0 : i32
    return %c0_i32, %c0_i32_0 : i32, i32
  }
  func.func @transform_6(%arg0: i32) -> (i32, i32) {
    %c0_i32 = arith.constant 0 : i32
    %c0_i32_0 = arith.constant 0 : i32
    %c0_i32_1 = arith.constant 0 : i32
    return %c0_i32, %c0_i32_0 : i32, i32
  }
  func.func @transform_7(%arg0: i32) -> (i32, i32) {
    %c0_i32 = arith.constant 0 : i32
    %c0_i32_0 = arith.constant 0 : i32
    %c0_i32_1 = arith.constant 0 : i32
    return %c0_i32, %c0_i32_0 : i32, i32
  }
  func.func @transform_8(%arg0: i32) -> (i32, i32) {
    %c0_i32 = arith.constant 0 : i32
    %c0_i32_0 = arith.constant 0 : i32
    %c0_i32_1 = arith.constant 0 : i32
    return %c0_i32, %c0_i32_0 : i32, i32
  }
  func.func @transform_9(%arg0: i32) -> (i32, i32) {
    %c0_i32 = arith.constant 0 : i32
    %c0_i32_0 = arith.constant 0 : i32
    %c0_i32_1 = arith.constant 0 : i32
    return %c0_i32, %c0_i32_0 : i32, i32
  }
  func.func @transform_10(%arg0: i32) -> (i32, i32) {
    %c0_i32 = arith.constant 0 : i32
    %c0_i32_0 = arith.constant 0 : i32
    %c0_i32_1 = arith.constant 0 : i32
    return %c0_i32, %c0_i32_0 : i32, i32
  }
  func.func @transform_11(%arg0: i32) -> (i32, i32) {
    %c0_i32 = arith.constant 0 : i32
    %c0_i32_0 = arith.constant 0 : i32
    %c0_i32_1 = arith.constant 0 : i32
    return %c0_i32, %c0_i32_0 : i32, i32
  }
  func.func @transform_12(%arg0: i32) -> (i32, i32) {
    %c0_i32 = arith.constant 0 : i32
    %c0_i32_0 = arith.constant 0 : i32
    %c0_i32_1 = arith.constant 0 : i32
    return %c0_i32, %c0_i32_0 : i32, i32
  }
}

</mosaic_0001>

<llo_original>
// kernel: tpu_custom_call.1
$region0: #{tpu_custom_call.1}
  #allocation0 [shape = 'u32[]', space=smem, size = 0x4, offset = 0x4, fixed_abs, tag = 'smem constant byte address 0x4 - core index']
  #allocation1 [shape = 'u32[144,128]{1,0:T(1,128)}', space=vmem, size = 0x12000, scoped, tag = 'internal scratch']
  %s0 = inlined_call_operand.hbm [shape: f32[32,64], index: 0, kind: input, shape index: {}]
  %s1 = inlined_call_operand.vmem [shape: f32[32,1], index: 1, kind: input, shape index: {}]
  %s2 = inlined_call_operand.vmem [shape: f32[32,1], index: 2, kind: input, shape index: {}]
  %s3 = inlined_call_operand.hbm [shape: bf16[3,64,128], index: 3, kind: input, shape index: {}]
  %s4 = inlined_call_operand.hbm [shape: bf16[3,128,128], index: 4, kind: input, shape index: {}]
  %s5 = inlined_call_operand.vmem [shape: f32[64,128], index: 5, kind: input, shape index: {}]
  %s6 = inlined_call_operand.hbm [shape: f32[128,128], index: 6, kind: input, shape index: {}]
  %s7 = inlined_call_operand.hbm [shape: f32[128,128], index: 7, kind: input, shape index: {}]
  %s8 = inlined_call_operand.vmem [shape: f32[1,128], index: 8, kind: input, shape index: {}]
  %s9 = inlined_call_operand.vmem [shape: f32[1,128], index: 9, kind: input, shape index: {}]
  %s10 = inlined_call_operand.vmem [shape: f32[1,128], index: 10, kind: input, shape index: {}]
  %s11 = inlined_call_operand.vmem [shape: f32[1,128], index: 11, kind: input, shape index: {}]
  %s12 = inlined_call_operand.hbm [shape: f32[32,128], index: 12, kind: output, shape index: {}]
  %s13 = sld [smem:[#allocation0]]
  $region78: #{tpu_custom_call.1} parent=0
    _
  %s15 = ssub.s32 1, %s13
  %s16 = scalar_select 0, %s15, %s13
  $region1: #{tpu_custom_call.1} parent=0
    #allocation2 [shape = 'u8[16384]{0}', space=vmem, size = 0x4000, scoped, tag = 'input window, operand 0, single buffered']
    #allocation3 [shape = 's32[1]{0}', space=sflag, size = 0x4, scoped, tag = 'scoped memory for tpu_custom_call.1']
    #allocation4 [shape = 's32[1]{0}', space=sflag, size = 0x4, scoped, tag = 'scoped memory for tpu_custom_call.1']
    #allocation5 [shape = 'u8[49152]{0}', space=vmem, size = 0xc000, scoped, tag = 'input window, operand 3, single buffered']
    #allocation6 [shape = 's32[1]{0}', space=sflag, size = 0x4, scoped, tag = 'scoped memory for tpu_custom_call.1']
    #allocation7 [shape = 'u8[98304]{0}', space=vmem, size = 0x18000, scoped, tag = 'input window, operand 4, single buffered']
    #allocation8 [shape = 'u8[65536]{0}', space=vmem, size = 0x10000, scoped, tag = 'input window, operand 6, single buffered']
    #allocation9 [shape = 's32[1]{0}', space=sflag, size = 0x4, scoped, tag = 'scoped memory for tpu_custom_call.1']
    #allocation10 [shape = 'u8[65536]{0}', space=vmem, size = 0x10000, scoped, tag = 'input window, operand 7, single buffered']
    #allocation11 [shape = 'u8[16384]{0}', space=vmem, size = 0x4000, scoped, tag = 'output window, operand 0, single buffered']
    %17 = vsyncpa [#allocation3], 0
    %18 = vsyncpa [#allocation6], 0
    %19 = vsyncpa [#allocation9], 0
    %20 = vsyncpa [#allocation4], 0
    // Predicated region
    $region2: #{tpu_custom_call.1} parent=1 // pred_check
      _
    $region3: #{tpu_custom_call.1} parent=1 // pred_check_branch
      %22 = sbr.rel (0) target = $region5
    $region4: #{tpu_custom_call.1} parent=1 // pred_region
      %s24 = ssub.s32 512, 512
      %25 = vsyncadd [#allocation3], %s24
      %s26 = sshll.u32 [#allocation2], 4
      %s27 = int_to_ptr.vmem [resolvable:$true] %s26
      %32 = dma.hbm_to_vmem [thread:$0]  %s0, 512, %s27, [#allocation3], 128, 128, 8
    $region5: #{tpu_custom_call.1} parent=1 // pred_fallthru
      _
    // Predicated region
    $region6: #{tpu_custom_call.1} parent=1 // pred_check
      _
    $region7: #{tpu_custom_call.1} parent=1 // pred_check_branch
      %34 = sbr.rel (0) target = $region9
    $region8: #{tpu_custom_call.1} parent=1 // pred_region
      _
    $region9: #{tpu_custom_call.1} parent=1 // pred_fallthru
      _
    // Predicated region
    $region10: #{tpu_custom_call.1} parent=1 // pred_check
      _
    $region11: #{tpu_custom_call.1} parent=1 // pred_check_branch
      %36 = sbr.rel (0) target = $region13
    $region12: #{tpu_custom_call.1} parent=1 // pred_region
      _
    $region13: #{tpu_custom_call.1} parent=1 // pred_fallthru
      _
    // Predicated region
    $region14: #{tpu_custom_call.1} parent=1 // pred_check
      _
    $region15: #{tpu_custom_call.1} parent=1 // pred_check_branch
      %38 = sbr.rel (0) target = $region17
    $region16: #{tpu_custom_call.1} parent=1 // pred_region
      %s40 = ssub.s32 1536, 1536
      %41 = vsyncadd [#allocation6], %s40
      %s42 = sshll.u32 [#allocation5], 4
      %s43 = int_to_ptr.vmem [resolvable:$true] %s42
      %48 = dma.hbm_to_vmem [thread:$0]  %s3, 1536, %s43, [#allocation6], 64, 64, 4
    $region17: #{tpu_custom_call.1} parent=1 // pred_fallthru
      _
    // Predicated region
    $region18: #{tpu_custom_call.1} parent=1 // pred_check
      _
    $region19: #{tpu_custom_call.1} parent=1 // pred_check_branch
      %50 = sbr.rel (0) target = $region21
    $region20: #{tpu_custom_call.1} parent=1 // pred_region
      %s52 = ssub.s32 3072, 3072
      %53 = vsyncadd [#allocation6], %s52
      %s54 = sshll.u32 [#allocation7], 4
      %s55 = int_to_ptr.vmem [resolvable:$true] %s54
      %60 = dma.hbm_to_vmem [thread:$0]  %s4, 3072, %s55, [#allocation6], 64, 64, 4
    $region21: #{tpu_custom_call.1} parent=1 // pred_fallthru
      _
    // Predicated region
    $region22: #{tpu_custom_call.1} parent=1 // pred_check
      _
    $region23: #{tpu_custom_call.1} parent=1 // pred_check_branch
      %62 = sbr.rel (0) target = $region25
    $region24: #{tpu_custom_call.1} parent=1 // pred_region
      _
    $region25: #{tpu_custom_call.1} parent=1 // pred_fallthru
      _
    // Predicated region
    $region26: #{tpu_custom_call.1} parent=1 // pred_check
      _
    $region27: #{tpu_custom_call.1} parent=1 // pred_check_branch
      %64 = sbr.rel (0) target = $region29
    $region28: #{tpu_custom_call.1} parent=1 // pred_region
      %s66 = ssub.s32 2048, 2048
      %67 = vsyncadd [#allocation9], %s66
      %s68 = sshll.u32 [#allocation8], 4
      %s69 = int_to_ptr.vmem [resolvable:$true] %s68
      %74 = dma.hbm_to_vmem [thread:$0]  %s6, 2048, %s69, [#allocation9], 128, 128, 8
    $region29: #{tpu_custom_call.1} parent=1 // pred_fallthru
      _
    // Predicated region
    $region30: #{tpu_custom_call.1} parent=1 // pred_check
      _
    $region31: #{tpu_custom_call.1} parent=1 // pred_check_branch
      %76 = sbr.rel (0) target = $region33
    $region32: #{tpu_custom_call.1} parent=1 // pred_region
      %s78 = ssub.s32 2048, 2048
      %79 = vsyncadd [#allocation9], %s78
      %s80 = sshll.u32 [#allocation10], 4
      %s81 = int_to_ptr.vmem [resolvable:$true] %s80
      %86 = dma.hbm_to_vmem [thread:$0]  %s7, 2048, %s81, [#allocation9], 128, 128, 8
    $region33: #{tpu_custom_call.1} parent=1 // pred_fallthru
      _
    // Predicated region
    $region34: #{tpu_custom_call.1} parent=1 // pred_check
      _
    $region35: #{tpu_custom_call.1} parent=1 // pred_check_branch
      %88 = sbr.rel (0) target = $region37
    $region36: #{tpu_custom_call.1} parent=1 // pred_region
      _
    $region37: #{tpu_custom_call.1} parent=1 // pred_fallthru
      _
    // Predicated region
    $region38: #{tpu_custom_call.1} parent=1 // pred_check
      _
    $region39: #{tpu_custom_call.1} parent=1 // pred_check_branch
      %90 = sbr.rel (0) target = $region41
    $region40: #{tpu_custom_call.1} parent=1 // pred_region
      _
    $region41: #{tpu_custom_call.1} parent=1 // pred_fallthru
      _
    // Predicated region
    $region42: #{tpu_custom_call.1} parent=1 // pred_check
      _
    $region43: #{tpu_custom_call.1} parent=1 // pred_check_branch
      %92 = sbr.rel (0) target = $region45
    $region44: #{tpu_custom_call.1} parent=1 // pred_region
      _
    $region45: #{tpu_custom_call.1} parent=1 // pred_fallthru
      _
    // Predicated region
    $region46: #{tpu_custom_call.1} parent=1 // pred_check
      _
    $region47: #{tpu_custom_call.1} parent=1 // pred_check_branch
      %94 = sbr.rel (0) target = $region49
    $region48: #{tpu_custom_call.1} parent=1 // pred_region
      _
    $region49: #{tpu_custom_call.1} parent=1 // pred_fallthru
      _
    // Predicated region
    $region50: #{tpu_custom_call.1} parent=1 // pred_check
      _
    $region51: #{tpu_custom_call.1} parent=1 // pred_check_branch
      %96 = sbr.rel (0) target = $region53
    $region52: #{tpu_custom_call.1} parent=1 // pred_region
      %97 = dma.done [#allocation3], 512
    $region53: #{tpu_custom_call.1} parent=1 // pred_fallthru
      _
    // Predicated region
    $region54: #{tpu_custom_call.1} parent=1 // pred_check
      _
    $region55: #{tpu_custom_call.1} parent=1 // pred_check_branch
      %99 = sbr.rel (0) target = $region57
    $region56: #{tpu_custom_call.1} parent=1 // pred_region
      %100 = dma.done [#allocation6], 1536
    $region57: #{tpu_custom_call.1} parent=1 // pred_fallthru
      _
    // Predicated region
    $region58: #{tpu_custom_call.1} parent=1 // pred_check
      _
    $region59: #{tpu_custom_call.1} parent=1 // pred_check_branch
      %102 = sbr.rel (0) target = $region61
    $region60: #{tpu_custom_call.1} parent=1 // pred_region
      %103 = dma.done [#allocation6], 3072
    $region61: #{tpu_custom_call.1} parent=1 // pred_fallthru
      _
    // Predicated region
    $region62: #{tpu_custom_call.1} parent=1 // pred_check
      _
    $region63: #{tpu_custom_call.1} parent=1 // pred_check_branch
      %105 = sbr.rel (0) target = $region65
    $region64: #{tpu_custom_call.1} parent=1 // pred_region
      %106 = dma.done [#allocation9], 2048
    $region65: #{tpu_custom_call.1} parent=1 // pred_fallthru
      _
    // Predicated region
    $region66: #{tpu_custom_call.1} parent=1 // pred_check
      _
    $region67: #{tpu_custom_call.1} parent=1 // pred_check_branch
      %108 = sbr.rel (0) target = $region69
    $region68: #{tpu_custom_call.1} parent=1 // pred_region
      %109 = dma.done [#allocation9], 2048
    $region69: #{tpu_custom_call.1} parent=1 // pred_fallthru
      _
    %v111 = vld [vmem:[#allocation2] sm:$0xff]
    %v112 = vld [vmem:[#allocation2 + $0x8] sm:$0xff]
    %v113 = vld [vmem:[#allocation2 + $0x10] sm:$0xff]
    %v114 = vld [vmem:[#allocation2 + $0x18] sm:$0xff]
    %v115 = vld [vmem:[%s1] sm:$0xff]
    %v116 = vld [vmem:[%s1 + $0x8] sm:$0xff]
    %v117 = vld [vmem:[%s1 + $0x10] sm:$0xff]
    %v118 = vld [vmem:[%s1 + $0x18] sm:$0xff]
    %v119 = vld [vmem:[%s2] sm:$0xff]
    %v120 = vld [vmem:[%s2 + $0x8] sm:$0xff]
    %v121 = vld [vmem:[%s2 + $0x10] sm:$0xff]
    %v122 = vld [vmem:[%s2 + $0x18] sm:$0xff]
    %v123 = vrot.slane %v111, 7
    %v124 = vrot.slane %v112, 7
    %v125 = vrot.slane %v113, 7
    %v126 = vrot.slane %v114, 7
    %v127 = vlaneseq
    %v128 = vshrl.u32 %v127, 7
    %vm129 = vcmp.lt.s32.totalorder %v128, 1
    %v130 = vsel %vm129, %v125, %v126
    %v131 = vsel %vm129, %v124, %v125
    %v132 = vsel %vm129, %v123, %v124
    %v133 = vsel %vm129, %v126, %v123
    %135 = vset.pattern.permute.xlu0 0
    %136 = vperm.xlu0 %135, %v115
    %v137 = vpop.permute.xlu0 %136
    %140 = vset.pattern.permute.xlu0 0
    %141 = vperm.xlu0 %140, %v116
    %v142 = vpop.permute.xlu0 %141
    %145 = vset.pattern.permute.xlu0 0
    %146 = vperm.xlu0 %145, %v117
    %v147 = vpop.permute.xlu0 %146
    %150 = vset.pattern.permute.xlu0 0
    %151 = vperm.xlu0 %150, %v118
    %v152 = vpop.permute.xlu0 %151
    %v154 = vmul.f32 %v133, %v137
    %v155 = vmul.f32 %v132, %v142
    %v156 = vmul.f32 %v131, %v147
    %v157 = vmul.f32 %v130, %v152
    %v158 = vrot.slane %v111, 1
    %v159 = vrot.slane %v112, 1
    %v160 = vrot.slane %v113, 1
    %v161 = vrot.slane %v114, 1
    %vm162 = vcmp.lt.s32.totalorder %v128, 7
    %v163 = vsel %vm162, %v160, %v161
    %v164 = vsel %vm162, %v159, %v160
    %v165 = vsel %vm162, %v158, %v159
    %v166 = vsel %vm162, %v161, %v158
    %168 = vset.pattern.permute.xlu0 0
    %169 = vperm.xlu0 %168, %v119
    %v170 = vpop.permute.xlu0 %169
    %173 = vset.pattern.permute.xlu0 0
    %174 = vperm.xlu0 %173, %v120
    %v175 = vpop.permute.xlu0 %174
    %178 = vset.pattern.permute.xlu0 0
    %179 = vperm.xlu0 %178, %v121
    %v180 = vpop.permute.xlu0 %179
    %183 = vset.pattern.permute.xlu0 0
    %184 = vperm.xlu0 %183, %v122
    %v185 = vpop.permute.xlu0 %184
    %v187 = vmul.f32 %v165, %v170
    %v188 = vmul.f32 %v164, %v175
    %v189 = vmul.f32 %v163, %v180
    %v190 = vmul.f32 %v166, %v185
    %v191 = vpack.c.bf16 %v155, %v154
    %v192 = vpack.c.bf16 %v157, %v156
    %v193 = vld [vmem:[#allocation5] sm:$0xf]
    %v194 = vld [vmem:[#allocation5 + $0x4] sm:$0xf]
    %v195 = vld [vmem:[#allocation5 + $0x8] sm:$0xf]
    %v196 = vld [vmem:[#allocation5 + $0xc] sm:$0xf]
    %v197 = vld [vmem:[#allocation5 + $0x10] sm:$0xf]
    %v198 = vld [vmem:[#allocation5 + $0x14] sm:$0xf]
    %v199 = vld [vmem:[#allocation5 + $0x18] sm:$0xf]
    %v200 = vld [vmem:[#allocation5 + $0x1c] sm:$0xf]
    %v201 = vpack.c.bf16 %v112, %v111
    %v202 = vpack.c.bf16 %v114, %v113
    %s203 = scalar_lea.vmem [#allocation5], 32
    %v204 = vld [vmem:[%s203] sm:$0xf]
    %v205 = vld [vmem:[%s203 + $0x4] sm:$0xf]
    %v206 = vld [vmem:[%s203 + $0x8] sm:$0xf]
    %v207 = vld [vmem:[%s203 + $0xc] sm:$0xf]
    %v208 = vld [vmem:[%s203 + $0x10] sm:$0xf]
    %v209 = vld [vmem:[%s203 + $0x14] sm:$0xf]
    %v210 = vld [vmem:[%s203 + $0x18] sm:$0xf]
    %v211 = vld [vmem:[%s203 + $0x1c] sm:$0xf]
    %v220 = vunpack.c.l.b16 %v204
    %v221 = vunpack.c.l.b16 %v205
    %v222 = vunpack.c.l.b16 %v206
    %v223 = vunpack.c.l.b16 %v207
    %v224 = vunpack.c.l.b16 %v208
    %v225 = vunpack.c.l.b16 %v209
    %v226 = vunpack.c.l.b16 %v210
    %v227 = vunpack.c.l.b16 %v211
    %v228 = vpack.c.b16 %v221, %v220
    %v229 = vpack.c.b16 %v223, %v222
    %v230 = vpack.c.b16 %v225, %v224
    %v231 = vpack.c.b16 %v227, %v226
    %vm236 = vcmask 523264
    %v238 = vsel %vm236, %v201, 0
    %v241 = vsel %vm236, %v202, 0
    %243 = vmatprep.subr.bf16.mxu0 0
    %244 = vmatpush1.bf16.msra.mxu0 0
    %245 = vmatprep.subr.bf16.mxu0 0
    %246 = vmatpush1.bf16.msra.mxu0 0
    %247 = vmatprep.subr.bf16.mxu0 0
    %248 = vmatpush1.bf16.msra.mxu0 0
    %249 = vmatprep.subr.bf16.mxu0 0
    %250 = vmatpush1.bf16.msra.mxu0 0
    %251 = vmatprep.subr.bf16.mxu0 0
    %252 = vmatpush1.bf16.msra.mxu0 %v231
    %253 = vmatprep.subr.bf16.mxu0 0
    %254 = vmatpush1.bf16.msra.mxu0 %v230
    %255 = vmatprep.subr.bf16.mxu0 0
    %256 = vmatpush1.bf16.msra.mxu0 %v229
    %257 = vmatprep.subr.bf16.mxu0 0
    %258 = vmatpush1.bf16.msra.mxu0 %v228
    %259 = vmatprep.subr.bf16.mxu0 0
    %260 = vmatpush2.bf16.msra.mxu0 0
    %261 = vmatprep.subr.bf16.mxu0 0
    %262 = vmatpush2.bf16.msra.mxu0 0
    %263 = vmatprep.subr.bf16.mxu0 0
    %264 = vmatpush2.bf16.msra.mxu0 0
    %265 = vmatprep.subr.bf16.mxu0 0
    %266 = vmatpush2.bf16.msra.mxu0 0
    %267 = vmatprep.subr.bf16.mxu0 0
    %268 = vmatpush2.bf16.msra.mxu0 0
    %269 = vmatprep.subr.bf16.mxu0 0
    %270 = vmatpush2.bf16.msra.mxu0 0
    %271 = vmatprep.subr.bf16.mxu0 0
    %272 = vmatpush2.bf16.msra.mxu0 0
    %273 = vmatprep.subr.bf16.mxu0 0
    %274 = vmatpush2.bf16.msra.mxu0 0
    %275 = vmatprep.mubr.bf16.mxu0 0
    %276 = vmatmul.mubr.bf16.gmra.mxu0 %v238
    %v277 = vpop.f32.mrf.mxu0
    %v278 = vadd.f32 0.0, %v277
    %v279 = vpop.f32.mrf.mxu0
    %v280 = vpop.f32.mrf.mxu0
    %v281 = vadd.f32 0.0, %v280
    %v282 = vpop.f32.mrf.mxu0
    %283 = vmatprep.mubr.bf16.mxu0 0
    %284 = vmatmul.mubr.bf16.gmra.mxu0 %v241
    %v285 = vpop.f32.mrf.mxu0
    %v286 = vadd.f32 0.0, %v285
    %v287 = vpop.f32.mrf.mxu0
    %v288 = vpop.f32.mrf.mxu0
    %v289 = vadd.f32 0.0, %v288
    %v290 = vpop.f32.mrf.mxu0
    %291 = vdwg.mxu0
    %v300 = vunpack.c.l.b16 %v193
    %v301 = vunpack.c.l.b16 %v194
    %v302 = vunpack.c.l.b16 %v195
    %v303 = vunpack.c.l.b16 %v196
    %v304 = vunpack.c.l.b16 %v197
    %v305 = vunpack.c.l.b16 %v198
    %v306 = vunpack.c.l.b16 %v199
    %v307 = vunpack.c.l.b16 %v200
    %v308 = vpack.c.b16 %v301, %v300
    %v309 = vpack.c.b16 %v303, %v302
    %v310 = vpack.c.b16 %v305, %v304
    %v311 = vpack.c.b16 %v307, %v306
    %v317 = vsel %vm236, %v191, 0
    %v320 = vsel %vm236, %v192, 0
    %322 = vmatprep.subr.bf16.mxu0 0
    %323 = vmatpush1.bf16.msra.mxu0 0
    %324 = vmatprep.subr.bf16.mxu0 0
    %325 = vmatpush1.bf16.msra.mxu0 0
    %326 = vmatprep.subr.bf16.mxu0 0
    %327 = vmatpush1.bf16.msra.mxu0 0
    %328 = vmatprep.subr.bf16.mxu0 0
    %329 = vmatpush1.bf16.msra.mxu0 0
    %330 = vmatprep.subr.bf16.mxu0 0
    %331 = vmatpush1.bf16.msra.mxu0 %v311
    %332 = vmatprep.subr.bf16.mxu0 0
    %333 = vmatpush1.bf16.msra.mxu0 %v310
    %334 = vmatprep.subr.bf16.mxu0 0
    %335 = vmatpush1.bf16.msra.mxu0 %v309
    %336 = vmatprep.subr.bf16.mxu0 0
    %337 = vmatpush1.bf16.msra.mxu0 %v308
    %338 = vmatprep.subr.bf16.mxu0 0
    %339 = vmatpush2.bf16.msra.mxu0 0
    %340 = vmatprep.subr.bf16.mxu0 0
    %341 = vmatpush2.bf16.msra.mxu0 0
    %342 = vmatprep.subr.bf16.mxu0 0
    %343 = vmatpush2.bf16.msra.mxu0 0
    %344 = vmatprep.subr.bf16.mxu0 0
    %345 = vmatpush2.bf16.msra.mxu0 0
    %346 = vmatprep.subr.bf16.mxu0 0
    %347 = vmatpush2.bf16.msra.mxu0 0
    %348 = vmatprep.subr.bf16.mxu0 0
    %349 = vmatpush2.bf16.msra.mxu0 0
    %350 = vmatprep.subr.bf16.mxu0 0
    %351 = vmatpush2.bf16.msra.mxu0 0
    %352 = vmatprep.subr.bf16.mxu0 0
    %353 = vmatpush2.bf16.msra.mxu0 0
    %354 = vmatprep.mubr.bf16.mxu0 0
    %355 = vmatmul.mubr.bf16.gmra.mxu0 %v317
    %v356 = vpop.f32.mrf.mxu0
    %v357 = vadd.f32 %v278, %v356
    %v358 = vpop.f32.mrf.mxu0
    %v359 = vpop.f32.mrf.mxu0
    %v360 = vadd.f32 %v281, %v359
    %v361 = vpop.f32.mrf.mxu0
    %362 = vmatprep.mubr.bf16.mxu0 0
    %363 = vmatmul.mubr.bf16.gmra.mxu0 %v320
    %v364 = vpop.f32.mrf.mxu0
    %v365 = vadd.f32 %v286, %v364
    %v366 = vpop.f32.mrf.mxu0
    %v367 = vpop.f32.mrf.mxu0
    %v368 = vadd.f32 %v289, %v367
    %v369 = vpop.f32.mrf.mxu0
    %370 = vdwg.mxu0
    %v371 = vpack.c.bf16 %v188, %v187
    %v372 = vpack.c.bf16 %v190, %v189
    %s373 = scalar_lea.vmem [#allocation5], 64
    %v374 = vld [vmem:[%s373] sm:$0xf]
    %v375 = vld [vmem:[%s373 + $0x4] sm:$0xf]
    %v376 = vld [vmem:[%s373 + $0x8] sm:$0xf]
    %v377 = vld [vmem:[%s373 + $0xc] sm:$0xf]
    %v378 = vld [vmem:[%s373 + $0x10] sm:$0xf]
    %v379 = vld [vmem:[%s373 + $0x14] sm:$0xf]
    %v380 = vld [vmem:[%s373 + $0x18] sm:$0xf]
    %v381 = vld [vmem:[%s373 + $0x1c] sm:$0xf]
    %v390 = vunpack.c.l.b16 %v374
    %v391 = vunpack.c.l.b16 %v375
    %v392 = vunpack.c.l.b16 %v376
    %v393 = vunpack.c.l.b16 %v377
    %v394 = vunpack.c.l.b16 %v378
    %v395 = vunpack.c.l.b16 %v379
    %v396 = vunpack.c.l.b16 %v380
    %v397 = vunpack.c.l.b16 %v381
    %v398 = vpack.c.b16 %v391, %v390
    %v399 = vpack.c.b16 %v393, %v392
    %v400 = vpack.c.b16 %v395, %v394
    %v401 = vpack.c.b16 %v397, %v396
    %v407 = vsel %vm236, %v371, 0
    %v410 = vsel %vm236, %v372, 0
    %412 = vmatprep.subr.bf16.mxu0 0
    %413 = vmatpush1.bf16.msra.mxu0 0
    %414 = vmatprep.subr.bf16.mxu0 0
    %415 = vmatpush1.bf16.msra.mxu0 0
    %416 = vmatprep.subr.bf16.mxu0 0
    %417 = vmatpush1.bf16.msra.mxu0 0
    %418 = vmatprep.subr.bf16.mxu0 0
    %419 = vmatpush1.bf16.msra.mxu0 0
    %420 = vmatprep.subr.bf16.mxu0 0
    %421 = vmatpush1.bf16.msra.mxu0 %v401
    %422 = vmatprep.subr.bf16.mxu0 0
    %423 = vmatpush1.bf16.msra.mxu0 %v400
    %424 = vmatprep.subr.bf16.mxu0 0
    %425 = vmatpush1.bf16.msra.mxu0 %v399
    %426 = vmatprep.subr.bf16.mxu0 0
    %427 = vmatpush1.bf16.msra.mxu0 %v398
    %428 = vmatprep.subr.bf16.mxu0 0
    %429 = vmatpush2.bf16.msra.mxu0 0
    %430 = vmatprep.subr.bf16.mxu0 0
    %431 = vmatpush2.bf16.msra.mxu0 0
    %432 = vmatprep.subr.bf16.mxu0 0
    %433 = vmatpush2.bf16.msra.mxu0 0
    %434 = vmatprep.subr.bf16.mxu0 0
    %435 = vmatpush2.bf16.msra.mxu0 0
    %436 = vmatprep.subr.bf16.mxu0 0
    %437 = vmatpush2.bf16.msra.mxu0 0
    %438 = vmatprep.subr.bf16.mxu0 0
    %439 = vmatpush2.bf16.msra.mxu0 0
    %440 = vmatprep.subr.bf16.mxu0 0
    %441 = vmatpush2.bf16.msra.mxu0 0
    %442 = vmatprep.subr.bf16.mxu0 0
    %443 = vmatpush2.bf16.msra.mxu0 0
    %444 = vmatprep.mubr.bf16.mxu0 0
    %445 = vmatmul.mubr.bf16.gmra.mxu0 %v407
    %v446 = vpop.f32.mrf.mxu0
    %v447 = vadd.f32 0.0, %v446
    %v448 = vpop.f32.mrf.mxu0
    %v449 = vpop.f32.mrf.mxu0
    %v450 = vadd.f32 0.0, %v449
    %v451 = vpop.f32.mrf.mxu0
    %452 = vmatprep.mubr.bf16.mxu0 0
    %453 = vmatmul.mubr.bf16.gmra.mxu0 %v410
    %v454 = vpop.f32.mrf.mxu0
    %v455 = vadd.f32 0.0, %v454
    %v456 = vpop.f32.mrf.mxu0
    %v457 = vpop.f32.mrf.mxu0
    %v458 = vadd.f32 0.0, %v457
    %v459 = vpop.f32.mrf.mxu0
    %460 = vdwg.mxu0
    %v461 = vadd.f32 %v357, %v447
    %v462 = vadd.f32 %v360, %v450
    %v463 = vadd.f32 %v365, %v455
    %v464 = vadd.f32 %v368, %v458
    %v465 = vadd.f32 %v461, %v462
    %v466 = vadd.f32 %v465, %v463
    %v467 = vadd.f32 %v466, %v464
    %v468 = vrot.slane %v467, 4
    %v469 = vadd.f32 %v467, %v468
    %v470 = vrot.slane %v469, 2
    %v471 = vadd.f32 %v469, %v470
    %v472 = vrot.slane %v471, 1
    %v473 = vadd.f32 %v471, %v472
    %v474 = vmul.f32 %v461, %v461
    %v475 = vmul.f32 %v462, %v462
    %v476 = vmul.f32 %v463, %v463
    %v477 = vmul.f32 %v464, %v464
    %v478 = vadd.f32 %v474, %v475
    %v479 = vadd.f32 %v478, %v476
    %v480 = vadd.f32 %v479, %v477
    %v481 = vrot.slane %v480, 4
    %v482 = vadd.f32 %v480, %v481
    %v483 = vrot.slane %v482, 2
    %v484 = vadd.f32 %v482, %v483
    %v485 = vrot.slane %v484, 1
    %v486 = vadd.f32 %v484, %v485
    %v487 = vld [vmem:[#allocation8] sm:$0xff]
    %v488 = vld [vmem:[#allocation8 + $0x8] sm:$0xff]
    %v489 = vld [vmem:[#allocation8 + $0x10] sm:$0xff]
    %v490 = vld [vmem:[#allocation8 + $0x18] sm:$0xff]
    %v491 = vld [vmem:[#allocation8 + $0x20] sm:$0xff]
    %v492 = vld [vmem:[#allocation8 + $0x28] sm:$0xff]
    %v493 = vld [vmem:[#allocation8 + $0x30] sm:$0xff]
    %v494 = vld [vmem:[#allocation8 + $0x38] sm:$0xff]
    %v495 = vld [vmem:[#allocation8 + $0x40] sm:$0xff]
    %v496 = vld [vmem:[#allocation8 + $0x48] sm:$0xff]
    %v497 = vld [vmem:[#allocation8 + $0x50] sm:$0xff]
    %v498 = vld [vmem:[#allocation8 + $0x58] sm:$0xff]
    %v499 = vld [vmem:[#allocation8 + $0x60] sm:$0xff]
    %v500 = vld [vmem:[#allocation8 + $0x68] sm:$0xff]
    %v501 = vld [vmem:[#allocation8 + $0x70] sm:$0xff]
    %v502 = vld [vmem:[#allocation8 + $0x78] sm:$0xff]
    %503 = vmatprep.subr.mxu0 0.0
    %504 = vmatpush1.msra.mxu0 %v502
    %505 = vmatprep.subr.mxu0 0.0
    %506 = vmatpush1.msra.mxu0 %v501
    %507 = vmatprep.subr.mxu0 0.0
    %508 = vmatpush1.msra.mxu0 %v500
    %509 = vmatprep.subr.mxu0 0.0
    %510 = vmatpush1.msra.mxu0 %v499
    %511 = vmatprep.subr.mxu0 0.0
    %512 = vmatpush1.msra.mxu0 %v498
    %513 = vmatprep.subr.mxu0 0.0
    %514 = vmatpush1.msra.mxu0 %v497
    %515 = vmatprep.subr.mxu0 0.0
    %516 = vmatpush1.msra.mxu0 %v496
    %517 = vmatprep.subr.mxu0 0.0
    %518 = vmatpush1.msra.mxu0 %v495
    %519 = vmatprep.subr.mxu0 0.0
    %520 = vmatpush1.msra.mxu0 %v494
    %521 = vmatprep.subr.mxu0 0.0
    %522 = vmatpush1.msra.mxu0 %v493
    %523 = vmatprep.subr.mxu0 0.0
    %524 = vmatpush1.msra.mxu0 %v492
    %525 = vmatprep.subr.mxu0 0.0
    %526 = vmatpush1.msra.mxu0 %v491
    %527 = vmatprep.subr.mxu0 0.0
    %528 = vmatpush1.msra.mxu0 %v490
    %529 = vmatprep.subr.mxu0 0.0
    %530 = vmatpush1.msra.mxu0 %v489
    %531 = vmatprep.subr.mxu0 0.0
    %532 = vmatpush1.msra.mxu0 %v488
    %533 = vmatprep.subr.mxu0 0.0
    %534 = vmatpush1.msra.mxu0 %v487
    %535 = vmatprep.subr.mxu0 0.0
    %536 = vmatpush2.msra.mxu0 0.0
    %537 = vmatprep.subr.mxu0 0.0
    %538 = vmatpush2.msra.mxu0 0.0
    %539 = vmatprep.subr.mxu0 0.0
    %540 = vmatpush2.msra.mxu0 0.0
    %541 = vmatprep.subr.mxu0 0.0
    %542 = vmatpush2.msra.mxu0 0.0
    %543 = vmatprep.subr.mxu0 0.0
    %544 = vmatpush2.msra.mxu0 0.0
    %545 = vmatprep.subr.mxu0 0.0
    %546 = vmatpush2.msra.mxu0 0.0
    %547 = vmatprep.subr.mxu0 0.0
    %548 = vmatpush2.msra.mxu0 0.0
    %549 = vmatprep.subr.mxu0 0.0
    %550 = vmatpush2.msra.mxu0 0.0
    %551 = vmatprep.subr.mxu0 0.0
    %552 = vmatpush2.msra.mxu0 0.0
    %553 = vmatprep.subr.mxu0 0.0
    %554 = vmatpush2.msra.mxu0 0.0
    %555 = vmatprep.subr.mxu0 0.0
    %556 = vmatpush2.msra.mxu0 0.0
    %557 = vmatprep.subr.mxu0 0.0
    %558 = vmatpush2.msra.mxu0 0.0
    %559 = vmatprep.subr.mxu0 0.0
    %560 = vmatpush2.msra.mxu0 0.0
    %561 = vmatprep.subr.mxu0 0.0
    %562 = vmatpush2.msra.mxu0 0.0
    %563 = vmatprep.subr.mxu0 0.0
    %564 = vmatpush2.msra.mxu0 0.0
    %565 = vmatprep.subr.mxu0 0.0
    %566 = vmatpush2.msra.mxu0 0.0
    %567 = vmatprep.mubr.f32.mxu0 0.0
    %568 = vmatmul.mubr.f32.gmra.mxu0 %v473
    %v569 = vpop.f32.mrf.mxu0
    %v570 = vadd.f32 0.0, %v569
    %v571 = vpop.f32.mrf.mxu0
    %572 = vdwg.mxu0
    %v573 = vmul.f32 %v570, 0.001953125
    %574 = vmatprep.subr.mxu0 0.0
    %575 = vmatpush1.msra.mxu0 %v502
    %576 = vmatprep.subr.mxu0 0.0
    %577 = vmatpush1.msra.mxu0 %v501
    %578 = vmatprep.subr.mxu0 0.0
    %579 = vmatpush1.msra.mxu0 %v500
    %580 = vmatprep.subr.mxu0 0.0
    %581 = vmatpush1.msra.mxu0 %v499
    %582 = vmatprep.subr.mxu0 0.0
    %583 = vmatpush1.msra.mxu0 %v498
    %584 = vmatprep.subr.mxu0 0.0
    %585 = vmatpush1.msra.mxu0 %v497
    %586 = vmatprep.subr.mxu0 0.0
    %587 = vmatpush1.msra.mxu0 %v496
    %588 = vmatprep.subr.mxu0 0.0
    %589 = vmatpush1.msra.mxu0 %v495
    %590 = vmatprep.subr.mxu0 0.0
    %591 = vmatpush1.msra.mxu0 %v494
    %592 = vmatprep.subr.mxu0 0.0
    %593 = vmatpush1.msra.mxu0 %v493
    %594 = vmatprep.subr.mxu0 0.0
    %595 = vmatpush1.msra.mxu0 %v492
    %596 = vmatprep.subr.mxu0 0.0
    %597 = vmatpush1.msra.mxu0 %v491
    %598 = vmatprep.subr.mxu0 0.0
    %599 = vmatpush1.msra.mxu0 %v490
    %600 = vmatprep.subr.mxu0 0.0
    %601 = vmatpush1.msra.mxu0 %v489
    %602 = vmatprep.subr.mxu0 0.0
    %603 = vmatpush1.msra.mxu0 %v488
    %604 = vmatprep.subr.mxu0 0.0
    %605 = vmatpush1.msra.mxu0 %v487
    %606 = vmatprep.subr.mxu0 0.0
    %607 = vmatpush2.msra.mxu0 0.0
    %608 = vmatprep.subr.mxu0 0.0
    %609 = vmatpush2.msra.mxu0 0.0
    %610 = vmatprep.subr.mxu0 0.0
    %611 = vmatpush2.msra.mxu0 0.0
    %612 = vmatprep.subr.mxu0 0.0
    %613 = vmatpush2.msra.mxu0 0.0
    %614 = vmatprep.subr.mxu0 0.0
    %615 = vmatpush2.msra.mxu0 0.0
    %616 = vmatprep.subr.mxu0 0.0
    %617 = vmatpush2.msra.mxu0 0.0
    %618 = vmatprep.subr.mxu0 0.0
    %619 = vmatpush2.msra.mxu0 0.0
    %620 = vmatprep.subr.mxu0 0.0
    %621 = vmatpush2.msra.mxu0 0.0
    %622 = vmatprep.subr.mxu0 0.0
    %623 = vmatpush2.msra.mxu0 0.0
    %624 = vmatprep.subr.mxu0 0.0
    %625 = vmatpush2.msra.mxu0 0.0
    %626 = vmatprep.subr.mxu0 0.0
    %627 = vmatpush2.msra.mxu0 0.0
    %628 = vmatprep.subr.mxu0 0.0
    %629 = vmatpush2.msra.mxu0 0.0
    %630 = vmatprep.subr.mxu0 0.0
    %631 = vmatpush2.msra.mxu0 0.0
    %632 = vmatprep.subr.mxu0 0.0
    %633 = vmatpush2.msra.mxu0 0.0
    %634 = vmatprep.subr.mxu0 0.0
    %635 = vmatpush2.msra.mxu0 0.0
    %636 = vmatprep.subr.mxu0 0.0
    %637 = vmatpush2.msra.mxu0 0.0
    %638 = vmatprep.mubr.f32.mxu0 0.0
    %639 = vmatmul.mubr.f32.gmra.mxu0 %v486
    %v640 = vpop.f32.mrf.mxu0
    %v641 = vadd.f32 0.0, %v640
    %v642 = vpop.f32.mrf.mxu0
    %643 = vdwg.mxu0
    %v644 = vmul.f32 %v641, 0.001953125
    %v645 = vmul.f32 %v573, %v573
    %v646 = vsub.f32 %v644, %v645
    %v647 = vld [vmem:[%s8] sm:$0x1]
    %v648 = vadd.f32 %v646, 1e-05
    %v649 = vrsqrt.pop %v648
    %v650 = vmul.f32 %v647, %v649
    %v651 = vld [vmem:[%s9] sm:$0x1]
    %v652 = vmul.f32 %v573, %v650
    %v653 = vsub.f32 %v651, %v652
    %v655 = vlaneseq
    %v656 = vshrl.u32 %v655, 7
    %v657 = vsub.s32 0, %v656
    %v658 = vrot.slane %v650, %v657
    %v660 = vmul.f32 %v461, %v658
    %v661 = vmul.f32 %v462, %v658
    %v662 = vmul.f32 %v463, %v658
    %v663 = vmul.f32 %v464, %v658
    %v665 = vlaneseq
    %v666 = vshrl.u32 %v665, 7
    %v667 = vsub.s32 0, %v666
    %v668 = vrot.slane %v653, %v667
    %v670 = vadd.f32 %v660, %v668
    %v671 = vadd.f32 %v661, %v668
    %v672 = vadd.f32 %v662, %v668
    %v673 = vadd.f32 %v663, %v668
    %v674 = vmax.f32 %v670, 0.0
    %v675 = vmax.f32 %v671, 0.0
    %v676 = vmax.f32 %v672, 0.0
    %v677 = vmax.f32 %v673, 0.0
    %v678 = vrot.slane %v674, 7
    %v679 = vrot.slane %v675, 7
    %v680 = vrot.slane %v676, 7
    %v681 = vrot.slane %v677, 7
    %v682 = vsel %vm129, %v680, %v681
    %v683 = vsel %vm129, %v679, %v680
    %v684 = vsel %vm129, %v678, %v679
    %v685 = vsel %vm129, %v681, %v678
    %v686 = vmul.f32 %v685, %v137
    %v687 = vmul.f32 %v684, %v142
    %v688 = vmul.f32 %v683, %v147
    %v689 = vmul.f32 %v682, %v152
    %v690 = vrot.slane %v674, 1
    %v691 = vrot.slane %v675, 1
    %v692 = vrot.slane %v676, 1
    %v693 = vrot.slane %v677, 1
    %v694 = vsel %vm162, %v692, %v693
    %v695 = vsel %vm162, %v691, %v692
    %v696 = vsel %vm162, %v690, %v691
    %v697 = vsel %vm162, %v693, %v690
    %v698 = vmul.f32 %v696, %v170
    %v699 = vmul.f32 %v695, %v175
    %v700 = vmul.f32 %v694, %v180
    %v701 = vmul.f32 %v697, %v185
    %v702 = vpack.c.bf16 %v687, %v686
    %v703 = vpack.c.bf16 %v689, %v688
    %v704 = vld [vmem:[#allocation7] sm:$0xf]
    %v705 = vld [vmem:[#allocation7 + $0x4] sm:$0xf]
    %v706 = vld [vmem:[#allocation7 + $0x8] sm:$0xf]
    %v707 = vld [vmem:[#allocation7 + $0xc] sm:$0xf]
    %v708 = vld [vmem:[#allocation7 + $0x10] sm:$0xf]
    %v709 = vld [vmem:[#allocation7 + $0x14] sm:$0xf]
    %v710 = vld [vmem:[#allocation7 + $0x18] sm:$0xf]
    %v711 = vld [vmem:[#allocation7 + $0x1c] sm:$0xf]
    %v712 = vld [vmem:[#allocation7 + $0x20] sm:$0xf]
    %v713 = vld [vmem:[#allocation7 + $0x24] sm:$0xf]
    %v714 = vld [vmem:[#allocation7 + $0x28] sm:$0xf]
    %v715 = vld [vmem:[#allocation7 + $0x2c] sm:$0xf]
    %v716 = vld [vmem:[#allocation7 + $0x30] sm:$0xf]
    %v717 = vld [vmem:[#allocation7 + $0x34] sm:$0xf]
    %v718 = vld [vmem:[#allocation7 + $0x38] sm:$0xf]
    %v719 = vld [vmem:[#allocation7 + $0x3c] sm:$0xf]
    %v720 = vpack.c.bf16 %v675, %v674
    %v721 = vpack.c.bf16 %v677, %v676
    %s722 = scalar_lea.vmem [#allocation7], 64
    %v723 = vld [vmem:[%s722] sm:$0xf]
    %v724 = vld [vmem:[%s722 + $0x4] sm:$0xf]
    %v725 = vld [vmem:[%s722 + $0x8] sm:$0xf]
    %v726 = vld [vmem:[%s722 + $0xc] sm:$0xf]
    %v727 = vld [vmem:[%s722 + $0x10] sm:$0xf]
    %v728 = vld [vmem:[%s722 + $0x14] sm:$0xf]
    %v729 = vld [vmem:[%s722 + $0x18] sm:$0xf]
    %v730 = vld [vmem:[%s722 + $0x1c] sm:$0xf]
    %v731 = vld [vmem:[%s722 + $0x20] sm:$0xf]
    %v732 = vld [vmem:[%s722 + $0x24] sm:$0xf]
    %v733 = vld [vmem:[%s722 + $0x28] sm:$0xf]
    %v734 = vld [vmem:[%s722 + $0x2c] sm:$0xf]
    %v735 = vld [vmem:[%s722 + $0x30] sm:$0xf]
    %v736 = vld [vmem:[%s722 + $0x34] sm:$0xf]
    %v737 = vld [vmem:[%s722 + $0x38] sm:$0xf]
    %v738 = vld [vmem:[%s722 + $0x3c] sm:$0xf]
    %v755 = vunpack.c.l.b16 %v723
    %v756 = vunpack.c.l.b16 %v724
    %v757 = vunpack.c.l.b16 %v725
    %v758 = vunpack.c.l.b16 %v726
    %v759 = vunpack.c.l.b16 %v727
    %v760 = vunpack.c.l.b16 %v728
    %v761 = vunpack.c.l.b16 %v729
    %v762 = vunpack.c.l.b16 %v730
    %v763 = vunpack.c.l.b16 %v731
    %v764 = vunpack.c.l.b16 %v732
    %v765 = vunpack.c.l.b16 %v733
    %v766 = vunpack.c.l.b16 %v734
    %v767 = vunpack.c.l.b16 %v735
    %v768 = vunpack.c.l.b16 %v736
    %v769 = vunpack.c.l.b16 %v737
    %v770 = vunpack.c.l.b16 %v738
    %v771 = vpack.c.b16 %v756, %v755
    %v772 = vpack.c.b16 %v758, %v757
    %v773 = vpack.c.b16 %v760, %v759
    %v774 = vpack.c.b16 %v762, %v761
    %v775 = vpack.c.b16 %v764, %v763
    %v776 = vpack.c.b16 %v766, %v765
    %v777 = vpack.c.b16 %v768, %v767
    %v778 = vpack.c.b16 %v770, %v769
    %787 = vmatprep.subr.bf16.mxu0 0
    %788 = vmatpush1.bf16.msra.mxu0 %v778
    %789 = vmatprep.subr.bf16.mxu0 0
    %790 = vmatpush1.bf16.msra.mxu0 %v777
    %791 = vmatprep.subr.bf16.mxu0 0
    %792 = vmatpush1.bf16.msra.mxu0 %v776
    %793 = vmatprep.subr.bf16.mxu0 0
    %794 = vmatpush1.bf16.msra.mxu0 %v775
    %795 = vmatprep.subr.bf16.mxu0 0
    %796 = vmatpush1.bf16.msra.mxu0 %v774
    %797 = vmatprep.subr.bf16.mxu0 0
    %798 = vmatpush1.bf16.msra.mxu0 %v773
    %799 = vmatprep.subr.bf16.mxu0 0
    %800 = vmatpush1.bf16.msra.mxu0 %v772
    %801 = vmatprep.subr.bf16.mxu0 0
    %802 = vmatpush1.bf16.msra.mxu0 %v771
    %803 = vmatprep.subr.bf16.mxu0 0
    %804 = vmatpush2.bf16.msra.mxu0 0
    %805 = vmatprep.subr.bf16.mxu0 0
    %806 = vmatpush2.bf16.msra.mxu0 0
    %807 = vmatprep.subr.bf16.mxu0 0
    %808 = vmatpush2.bf16.msra.mxu0 0
    %809 = vmatprep.subr.bf16.mxu0 0
    %810 = vmatpush2.bf16.msra.mxu0 0
    %811 = vmatprep.subr.bf16.mxu0 0
    %812 = vmatpush2.bf16.msra.mxu0 0
    %813 = vmatprep.subr.bf16.mxu0 0
    %814 = vmatpush2.bf16.msra.mxu0 0
    %815 = vmatprep.subr.bf16.mxu0 0
    %816 = vmatpush2.bf16.msra.mxu0 0
    %817 = vmatprep.subr.bf16.mxu0 0
    %818 = vmatpush2.bf16.msra.mxu0 0
    %819 = vmatprep.mubr.bf16.mxu0 0
    %820 = vmatmul.mubr.bf16.gmra.mxu0 %v720
    %v821 = vpop.f32.mrf.mxu0
    %v822 = vadd.f32 0.0, %v821
    %v823 = vpop.f32.mrf.mxu0
    %v824 = vpop.f32.mrf.mxu0
    %v825 = vadd.f32 0.0, %v824
    %v826 = vpop.f32.mrf.mxu0
    %827 = vmatprep.mubr.bf16.mxu0 0
    %828 = vmatmul.mubr.bf16.gmra.mxu0 %v721
    %v829 = vpop.f32.mrf.mxu0
    %v830 = vadd.f32 0.0, %v829
    %v831 = vpop.f32.mrf.mxu0
    %v832 = vpop.f32.mrf.mxu0
    %v833 = vadd.f32 0.0, %v832
    %v834 = vpop.f32.mrf.mxu0
    %835 = vdwg.mxu0
    %v852 = vunpack.c.l.b16 %v704
    %v853 = vunpack.c.l.b16 %v705
    %v854 = vunpack.c.l.b16 %v706
    %v855 = vunpack.c.l.b16 %v707
    %v856 = vunpack.c.l.b16 %v708
    %v857 = vunpack.c.l.b16 %v709
    %v858 = vunpack.c.l.b16 %v710
    %v859 = vunpack.c.l.b16 %v711
    %v860 = vunpack.c.l.b16 %v712
    %v861 = vunpack.c.l.b16 %v713
    %v862 = vunpack.c.l.b16 %v714
    %v863 = vunpack.c.l.b16 %v715
    %v864 = vunpack.c.l.b16 %v716
    %v865 = vunpack.c.l.b16 %v717
    %v866 = vunpack.c.l.b16 %v718
    %v867 = vunpack.c.l.b16 %v719
    %v868 = vpack.c.b16 %v853, %v852
    %v869 = vpack.c.b16 %v855, %v854
    %v870 = vpack.c.b16 %v857, %v856
    %v871 = vpack.c.b16 %v859, %v858
    %v872 = vpack.c.b16 %v861, %v860
    %v873 = vpack.c.b16 %v863, %v862
    %v874 = vpack.c.b16 %v865, %v864
    %v875 = vpack.c.b16 %v867, %v866
    %884 = vmatprep.subr.bf16.mxu0 0
    %885 = vmatpush1.bf16.msra.mxu0 %v875
    %886 = vmatprep.subr.bf16.mxu0 0
    %887 = vmatpush1.bf16.msra.mxu0 %v874
    %888 = vmatprep.subr.bf16.mxu0 0
    %889 = vmatpush1.bf16.msra.mxu0 %v873
    %890 = vmatprep.subr.bf16.mxu0 0
    %891 = vmatpush1.bf16.msra.mxu0 %v872
    %892 = vmatprep.subr.bf16.mxu0 0
    %893 = vmatpush1.bf16.msra.mxu0 %v871
    %894 = vmatprep.subr.bf16.mxu0 0
    %895 = vmatpush1.bf16.msra.mxu0 %v870
    %896 = vmatprep.subr.bf16.mxu0 0
    %897 = vmatpush1.bf16.msra.mxu0 %v869
    %898 = vmatprep.subr.bf16.mxu0 0
    %899 = vmatpush1.bf16.msra.mxu0 %v868
    %900 = vmatprep.subr.bf16.mxu0 0
    %901 = vmatpush2.bf16.msra.mxu0 0
    %902 = vmatprep.subr.bf16.mxu0 0
    %903 = vmatpush2.bf16.msra.mxu0 0
    %904 = vmatprep.subr.bf16.mxu0 0
    %905 = vmatpush2.bf16.msra.mxu0 0
    %906 = vmatprep.subr.bf16.mxu0 0
    %907 = vmatpush2.bf16.msra.mxu0 0
    %908 = vmatprep.subr.bf16.mxu0 0
    %909 = vmatpush2.bf16.msra.mxu0 0
    %910 = vmatprep.subr.bf16.mxu0 0
    %911 = vmatpush2.bf16.msra.mxu0 0
    %912 = vmatprep.subr.bf16.mxu0 0
    %913 = vmatpush2.bf16.msra.mxu0 0
    %914 = vmatprep.subr.bf16.mxu0 0
    %915 = vmatpush2.bf16.msra.mxu0 0
    %916 = vmatprep.mubr.bf16.mxu0 0
    %917 = vmatmul.mubr.bf16.gmra.mxu0 %v702
    %v918 = vpop.f32.mrf.mxu0
    %v919 = vadd.f32 %v822, %v918
    %v920 = vpop.f32.mrf.mxu0
    %v921 = vpop.f32.mrf.mxu0
    %v922 = vadd.f32 %v825, %v921
    %v923 = vpop.f32.mrf.mxu0
    %924 = vmatprep.mubr.bf16.mxu0 0
    %925 = vmatmul.mubr.bf16.gmra.mxu0 %v703
    %v926 = vpop.f32.mrf.mxu0
    %v927 = vadd.f32 %v830, %v926
    %v928 = vpop.f32.mrf.mxu0
    %v929 = vpop.f32.mrf.mxu0
    %v930 = vadd.f32 %v833, %v929
    %v931 = vpop.f32.mrf.mxu0
    %932 = vdwg.mxu0
    %v933 = vpack.c.bf16 %v699, %v698
    %v934 = vpack.c.bf16 %v701, %v700
    %s935 = scalar_lea.vmem [#allocation7], 128
    %v936 = vld [vmem:[%s935] sm:$0xf]
    %v937 = vld [vmem:[%s935 + $0x4] sm:$0xf]
    %v938 = vld [vmem:[%s935 + $0x8] sm:$0xf]
    %v939 = vld [vmem:[%s935 + $0xc] sm:$0xf]
    %v940 = vld [vmem:[%s935 + $0x10] sm:$0xf]
    %v941 = vld [vmem:[%s935 + $0x14] sm:$0xf]
    %v942 = vld [vmem:[%s935 + $0x18] sm:$0xf]
    %v943 = vld [vmem:[%s935 + $0x1c] sm:$0xf]
    %v944 = vld [vmem:[%s935 + $0x20] sm:$0xf]
    %v945 = vld [vmem:[%s935 + $0x24] sm:$0xf]
    %v946 = vld [vmem:[%s935 + $0x28] sm:$0xf]
    %v947 = vld [vmem:[%s935 + $0x2c] sm:$0xf]
    %v948 = vld [vmem:[%s935 + $0x30] sm:$0xf]
    %v949 = vld [vmem:[%s935 + $0x34] sm:$0xf]
    %v950 = vld [vmem:[%s935 + $0x38] sm:$0xf]
    %v951 = vld [vmem:[%s935 + $0x3c] sm:$0xf]
    %v968 = vunpack.c.l.b16 %v936
    %v969 = vunpack.c.l.b16 %v937
    %v970 = vunpack.c.l.b16 %v938
    %v971 = vunpack.c.l.b16 %v939
    %v972 = vunpack.c.l.b16 %v940
    %v973 = vunpack.c.l.b16 %v941
    %v974 = vunpack.c.l.b16 %v942
    %v975 = vunpack.c.l.b16 %v943
    %v976 = vunpack.c.l.b16 %v944
    %v977 = vunpack.c.l.b16 %v945
    %v978 = vunpack.c.l.b16 %v946
    %v979 = vunpack.c.l.b16 %v947
    %v980 = vunpack.c.l.b16 %v948
    %v981 = vunpack.c.l.b16 %v949
    %v982 = vunpack.c.l.b16 %v950
    %v983 = vunpack.c.l.b16 %v951
    %v984 = vpack.c.b16 %v969, %v968
    %v985 = vpack.c.b16 %v971, %v970
    %v986 = vpack.c.b16 %v973, %v972
    %v987 = vpack.c.b16 %v975, %v974
    %v988 = vpack.c.b16 %v977, %v976
    %v989 = vpack.c.b16 %v979, %v978
    %v990 = vpack.c.b16 %v981, %v980
    %v991 = vpack.c.b16 %v983, %v982
    %1000 = vmatprep.subr.bf16.mxu0 0
    %1001 = vmatpush1.bf16.msra.mxu0 %v991
    %1002 = vmatprep.subr.bf16.mxu0 0
    %1003 = vmatpush1.bf16.msra.mxu0 %v990
    %1004 = vmatprep.subr.bf16.mxu0 0
    %1005 = vmatpush1.bf16.msra.mxu0 %v989
    %1006 = vmatprep.subr.bf16.mxu0 0
    %1007 = vmatpush1.bf16.msra.mxu0 %v988
    %1008 = vmatprep.subr.bf16.mxu0 0
    %1009 = vmatpush1.bf16.msra.mxu0 %v987
    %1010 = vmatprep.subr.bf16.mxu0 0
    %1011 = vmatpush1.bf16.msra.mxu0 %v986
    %1012 = vmatprep.subr.bf16.mxu0 0
    %1013 = vmatpush1.bf16.msra.mxu0 %v985
    %1014 = vmatprep.subr.bf16.mxu0 0
    %1015 = vmatpush1.bf16.msra.mxu0 %v984
    %1016 = vmatprep.subr.bf16.mxu0 0
    %1017 = vmatpush2.bf16.msra.mxu0 0
    %1018 = vmatprep.subr.bf16.mxu0 0
    %1019 = vmatpush2.bf16.msra.mxu0 0
    %1020 = vmatprep.subr.bf16.mxu0 0
    %1021 = vmatpush2.bf16.msra.mxu0 0
    %1022 = vmatprep.subr.bf16.mxu0 0
    %1023 = vmatpush2.bf16.msra.mxu0 0
    %1024 = vmatprep.subr.bf16.mxu0 0
    %1025 = vmatpush2.bf16.msra.mxu0 0
    %1026 = vmatprep.subr.bf16.mxu0 0
    %1027 = vmatpush2.bf16.msra.mxu0 0
    %1028 = vmatprep.subr.bf16.mxu0 0
    %1029 = vmatpush2.bf16.msra.mxu0 0
    %1030 = vmatprep.subr.bf16.mxu0 0
    %1031 = vmatpush2.bf16.msra.mxu0 0
    %1032 = vmatprep.mubr.bf16.mxu0 0
    %1033 = vmatmul.mubr.bf16.gmra.mxu0 %v933
    %v1034 = vpop.f32.mrf.mxu0
    %v1035 = vadd.f32 0.0, %v1034
    %v1036 = vpop.f32.mrf.mxu0
    %v1037 = vpop.f32.mrf.mxu0
    %v1038 = vadd.f32 0.0, %v1037
    %v1039 = vpop.f32.mrf.mxu0
    %1040 = vmatprep.mubr.bf16.mxu0 0
    %1041 = vmatmul.mubr.bf16.gmra.mxu0 %v934
    %v1042 = vpop.f32.mrf.mxu0
    %v1043 = vadd.f32 0.0, %v1042
    %v1044 = vpop.f32.mrf.mxu0
    %v1045 = vpop.f32.mrf.mxu0
    %v1046 = vadd.f32 0.0, %v1045
    %v1047 = vpop.f32.mrf.mxu0
    %1048 = vdwg.mxu0
    %v1049 = vadd.f32 %v919, %v1035
    %v1050 = vadd.f32 %v922, %v1038
    %v1051 = vadd.f32 %v927, %v1043
    %v1052 = vadd.f32 %v930, %v1046
    %v1053 = vadd.f32 %v1049, %v1050
    %v1054 = vadd.f32 %v1053, %v1051
    %v1055 = vadd.f32 %v1054, %v1052
    %v1056 = vrot.slane %v1055, 4
    %v1057 = vadd.f32 %v1055, %v1056
    %v1058 = vrot.slane %v1057, 2
    %v1059 = vadd.f32 %v1057, %v1058
    %v1060 = vrot.slane %v1059, 1
    %v1061 = vadd.f32 %v1059, %v1060
    %v1062 = vmul.f32 %v1049, %v1049
    %v1063 = vmul.f32 %v1050, %v1050
    %v1064 = vmul.f32 %v1051, %v1051
    %v1065 = vmul.f32 %v1052, %v1052
    %v1066 = vadd.f32 %v1062, %v1063
    %v1067 = vadd.f32 %v1066, %v1064
    %v1068 = vadd.f32 %v1067, %v1065
    %v1069 = vrot.slane %v1068, 4
    %v1070 = vadd.f32 %v1068, %v1069
    %v1071 = vrot.slane %v1070, 2
    %v1072 = vadd.f32 %v1070, %v1071
    %v1073 = vrot.slane %v1072, 1
    %v1074 = vadd.f32 %v1072, %v1073
    %v1075 = vld [vmem:[#allocation10] sm:$0xff]
    %v1076 = vld [vmem:[#allocation10 + $0x8] sm:$0xff]
    %v1077 = vld [vmem:[#allocation10 + $0x10] sm:$0xff]
    %v1078 = vld [vmem:[#allocation10 + $0x18] sm:$0xff]
    %v1079 = vld [vmem:[#allocation10 + $0x20] sm:$0xff]
    %v1080 = vld [vmem:[#allocation10 + $0x28] sm:$0xff]
    %v1081 = vld [vmem:[#allocation10 + $0x30] sm:$0xff]
    %v1082 = vld [vmem:[#allocation10 + $0x38] sm:$0xff]
    %v1083 = vld [vmem:[#allocation10 + $0x40] sm:$0xff]
    %v1084 = vld [vmem:[#allocation10 + $0x48] sm:$0xff]
    %v1085 = vld [vmem:[#allocation10 + $0x50] sm:$0xff]
    %v1086 = vld [vmem:[#allocation10 + $0x58] sm:$0xff]
    %v1087 = vld [vmem:[#allocation10 + $0x60] sm:$0xff]
    %v1088 = vld [vmem:[#allocation10 + $0x68] sm:$0xff]
    %v1089 = vld [vmem:[#allocation10 + $0x70] sm:$0xff]
    %v1090 = vld [vmem:[#allocation10 + $0x78] sm:$0xff]
    %1091 = vmatprep.subr.mxu0 0.0
    %1092 = vmatpush1.msra.mxu0 %v1090
    %1093 = vmatprep.subr.mxu0 0.0
    %1094 = vmatpush1.msra.mxu0 %v1089
    %1095 = vmatprep.subr.mxu0 0.0
    %1096 = vmatpush1.msra.mxu0 %v1088
    %1097 = vmatprep.subr.mxu0 0.0
    %1098 = vmatpush1.msra.mxu0 %v1087
    %1099 = vmatprep.subr.mxu0 0.0
    %1100 = vmatpush1.msra.mxu0 %v1086
    %1101 = vmatprep.subr.mxu0 0.0
    %1102 = vmatpush1.msra.mxu0 %v1085
    %1103 = vmatprep.subr.mxu0 0.0
    %1104 = vmatpush1.msra.mxu0 %v1084
    %1105 = vmatprep.subr.mxu0 0.0
    %1106 = vmatpush1.msra.mxu0 %v1083
    %1107 = vmatprep.subr.mxu0 0.0
    %1108 = vmatpush1.msra.mxu0 %v1082
    %1109 = vmatprep.subr.mxu0 0.0
    %1110 = vmatpush1.msra.mxu0 %v1081
    %1111 = vmatprep.subr.mxu0 0.0
    %1112 = vmatpush1.msra.mxu0 %v1080
    %1113 = vmatprep.subr.mxu0 0.0
    %1114 = vmatpush1.msra.mxu0 %v1079
    %1115 = vmatprep.subr.mxu0 0.0
    %1116 = vmatpush1.msra.mxu0 %v1078
    %1117 = vmatprep.subr.mxu0 0.0
    %1118 = vmatpush1.msra.mxu0 %v1077
    %1119 = vmatprep.subr.mxu0 0.0
    %1120 = vmatpush1.msra.mxu0 %v1076
    %1121 = vmatprep.subr.mxu0 0.0
    %1122 = vmatpush1.msra.mxu0 %v1075
    %1123 = vmatprep.subr.mxu0 0.0
    %1124 = vmatpush2.msra.mxu0 0.0
    %1125 = vmatprep.subr.mxu0 0.0
    %1126 = vmatpush2.msra.mxu0 0.0
    %1127 = vmatprep.subr.mxu0 0.0
    %1128 = vmatpush2.msra.mxu0 0.0
    %1129 = vmatprep.subr.mxu0 0.0
    %1130 = vmatpush2.msra.mxu0 0.0
    %1131 = vmatprep.subr.mxu0 0.0
    %1132 = vmatpush2.msra.mxu0 0.0
    %1133 = vmatprep.subr.mxu0 0.0
    %1134 = vmatpush2.msra.mxu0 0.0
    %1135 = vmatprep.subr.mxu0 0.0
    %1136 = vmatpush2.msra.mxu0 0.0
    %1137 = vmatprep.subr.mxu0 0.0
    %1138 = vmatpush2.msra.mxu0 0.0
    %1139 = vmatprep.subr.mxu0 0.0
    %1140 = vmatpush2.msra.mxu0 0.0
    %1141 = vmatprep.subr.mxu0 0.0
    %1142 = vmatpush2.msra.mxu0 0.0
    %1143 = vmatprep.subr.mxu0 0.0
    %1144 = vmatpush2.msra.mxu0 0.0
    %1145 = vmatprep.subr.mxu0 0.0
    %1146 = vmatpush2.msra.mxu0 0.0
    %1147 = vmatprep.subr.mxu0 0.0
    %1148 = vmatpush2.msra.mxu0 0.0
    %1149 = vmatprep.subr.mxu0 0.0
    %1150 = vmatpush2.msra.mxu0 0.0
    %1151 = vmatprep.subr.mxu0 0.0
    %1152 = vmatpush2.msra.mxu0 0.0
    %1153 = vmatprep.subr.mxu0 0.0
    %1154 = vmatpush2.msra.mxu0 0.0
    %1155 = vmatprep.mubr.f32.mxu0 0.0
    %1156 = vmatmul.mubr.f32.gmra.mxu0 %v1061
    %v1157 = vpop.f32.mrf.mxu0
    %v1158 = vadd.f32 0.0, %v1157
    %v1159 = vpop.f32.mrf.mxu0
    %1160 = vdwg.mxu0
    %v1161 = vmul.f32 %v1158, 0.001953125
    %1162 = vmatprep.subr.mxu0 0.0
    %1163 = vmatpush1.msra.mxu0 %v1090
    %1164 = vmatprep.subr.mxu0 0.0
    %1165 = vmatpush1.msra.mxu0 %v1089
    %1166 = vmatprep.subr.mxu0 0.0
    %1167 = vmatpush1.msra.mxu0 %v1088
    %1168 = vmatprep.subr.mxu0 0.0
    %1169 = vmatpush1.msra.mxu0 %v1087
    %1170 = vmatprep.subr.mxu0 0.0
    %1171 = vmatpush1.msra.mxu0 %v1086
    %1172 = vmatprep.subr.mxu0 0.0
    %1173 = vmatpush1.msra.mxu0 %v1085
    %1174 = vmatprep.subr.mxu0 0.0
    %1175 = vmatpush1.msra.mxu0 %v1084
    %1176 = vmatprep.subr.mxu0 0.0
    %1177 = vmatpush1.msra.mxu0 %v1083
    %1178 = vmatprep.subr.mxu0 0.0
    %1179 = vmatpush1.msra.mxu0 %v1082
    %1180 = vmatprep.subr.mxu0 0.0
    %1181 = vmatpush1.msra.mxu0 %v1081
    %1182 = vmatprep.subr.mxu0 0.0
    %1183 = vmatpush1.msra.mxu0 %v1080
    %1184 = vmatprep.subr.mxu0 0.0
    %1185 = vmatpush1.msra.mxu0 %v1079
    %1186 = vmatprep.subr.mxu0 0.0
    %1187 = vmatpush1.msra.mxu0 %v1078
    %1188 = vmatprep.subr.mxu0 0.0
    %1189 = vmatpush1.msra.mxu0 %v1077
    %1190 = vmatprep.subr.mxu0 0.0
    %1191 = vmatpush1.msra.mxu0 %v1076
    %1192 = vmatprep.subr.mxu0 0.0
    %1193 = vmatpush1.msra.mxu0 %v1075
    %1194 = vmatprep.subr.mxu0 0.0
    %1195 = vmatpush2.msra.mxu0 0.0
    %1196 = vmatprep.subr.mxu0 0.0
    %1197 = vmatpush2.msra.mxu0 0.0
    %1198 = vmatprep.subr.mxu0 0.0
    %1199 = vmatpush2.msra.mxu0 0.0
    %1200 = vmatprep.subr.mxu0 0.0
    %1201 = vmatpush2.msra.mxu0 0.0
    %1202 = vmatprep.subr.mxu0 0.0
    %1203 = vmatpush2.msra.mxu0 0.0
    %1204 = vmatprep.subr.mxu0 0.0
    %1205 = vmatpush2.msra.mxu0 0.0
    %1206 = vmatprep.subr.mxu0 0.0
    %1207 = vmatpush2.msra.mxu0 0.0
    %1208 = vmatprep.subr.mxu0 0.0
    %1209 = vmatpush2.msra.mxu0 0.0
    %1210 = vmatprep.subr.mxu0 0.0
    %1211 = vmatpush2.msra.mxu0 0.0
    %1212 = vmatprep.subr.mxu0 0.0
    %1213 = vmatpush2.msra.mxu0 0.0
    %1214 = vmatprep.subr.mxu0 0.0
    %1215 = vmatpush2.msra.mxu0 0.0
    %1216 = vmatprep.subr.mxu0 0.0
    %1217 = vmatpush2.msra.mxu0 0.0
    %1218 = vmatprep.subr.mxu0 0.0
    %1219 = vmatpush2.msra.mxu0 0.0
    %1220 = vmatprep.subr.mxu0 0.0
    %1221 = vmatpush2.msra.mxu0 0.0
    %1222 = vmatprep.subr.mxu0 0.0
    %1223 = vmatpush2.msra.mxu0 0.0
    %1224 = vmatprep.subr.mxu0 0.0
    %1225 = vmatpush2.msra.mxu0 0.0
    %1226 = vmatprep.mubr.f32.mxu0 0.0
    %1227 = vmatmul.mubr.f32.gmra.mxu0 %v1074
    %v1228 = vpop.f32.mrf.mxu0
    %v1229 = vadd.f32 0.0, %v1228
    %v1230 = vpop.f32.mrf.mxu0
    %1231 = vdwg.mxu0
    %v1232 = vmul.f32 %v1229, 0.001953125
    %v1233 = vmul.f32 %v1161, %v1161
    %v1234 = vsub.f32 %v1232, %v1233
    %v1235 = vld [vmem:[%s10] sm:$0x1]
    %v1236 = vadd.f32 %v1234, 1e-05
    %v1237 = vrsqrt.pop %v1236
    %v1238 = vmul.f32 %v1235, %v1237
    %v1239 = vld [vmem:[%s11] sm:$0x1]
    %v1240 = vmul.f32 %v1161, %v1238
    %v1241 = vsub.f32 %v1239, %v1240
    %v1242 = vld [vmem:[%s5] sm:$0xff]
    %v1243 = vld [vmem:[%s5 + $0x8] sm:$0xff]
    %v1244 = vld [vmem:[%s5 + $0x10] sm:$0xff]
    %v1245 = vld [vmem:[%s5 + $0x18] sm:$0xff]
    %v1246 = vld [vmem:[%s5 + $0x20] sm:$0xff]
    %v1247 = vld [vmem:[%s5 + $0x28] sm:$0xff]
    %v1248 = vld [vmem:[%s5 + $0x30] sm:$0xff]
    %v1249 = vld [vmem:[%s5 + $0x38] sm:$0xff]
    %v1251 = vsel %vm236, %v111, 0
    %v1254 = vsel %vm236, %v112, 0
    %v1257 = vsel %vm236, %v113, 0
    %v1260 = vsel %vm236, %v114, 0
    %1262 = vmatprep.subr.mxu0 0.0
    %1263 = vmatpush1.msra.mxu0 0.0
    %1264 = vmatprep.subr.mxu0 0.0
    %1265 = vmatpush1.msra.mxu0 0.0
    %1266 = vmatprep.subr.mxu0 0.0
    %1267 = vmatpush1.msra.mxu0 0.0
    %1268 = vmatprep.subr.mxu0 0.0
    %1269 = vmatpush1.msra.mxu0 0.0
    %1270 = vmatprep.subr.mxu0 0.0
    %1271 = vmatpush1.msra.mxu0 0.0
    %1272 = vmatprep.subr.mxu0 0.0
    %1273 = vmatpush1.msra.mxu0 0.0
    %1274 = vmatprep.subr.mxu0 0.0
    %1275 = vmatpush1.msra.mxu0 0.0
    %1276 = vmatprep.subr.mxu0 0.0
    %1277 = vmatpush1.msra.mxu0 0.0
    %1278 = vmatprep.subr.mxu0 0.0
    %1279 = vmatpush1.msra.mxu0 %v1249
    %1280 = vmatprep.subr.mxu0 0.0
    %1281 = vmatpush1.msra.mxu0 %v1248
    %1282 = vmatprep.subr.mxu0 0.0
    %1283 = vmatpush1.msra.mxu0 %v1247
    %1284 = vmatprep.subr.mxu0 0.0
    %1285 = vmatpush1.msra.mxu0 %v1246
    %1286 = vmatprep.subr.mxu0 0.0
    %1287 = vmatpush1.msra.mxu0 %v1245
    %1288 = vmatprep.subr.mxu0 0.0
    %1289 = vmatpush1.msra.mxu0 %v1244
    %1290 = vmatprep.subr.mxu0 0.0
    %1291 = vmatpush1.msra.mxu0 %v1243
    %1292 = vmatprep.subr.mxu0 0.0
    %1293 = vmatpush1.msra.mxu0 %v1242
    %1294 = vmatprep.subr.mxu0 0.0
    %1295 = vmatpush2.msra.mxu0 0.0
    %1296 = vmatprep.subr.mxu0 0.0
    %1297 = vmatpush2.msra.mxu0 0.0
    %1298 = vmatprep.subr.mxu0 0.0
    %1299 = vmatpush2.msra.mxu0 0.0
    %1300 = vmatprep.subr.mxu0 0.0
    %1301 = vmatpush2.msra.mxu0 0.0
    %1302 = vmatprep.subr.mxu0 0.0
    %1303 = vmatpush2.msra.mxu0 0.0
    %1304 = vmatprep.subr.mxu0 0.0
    %1305 = vmatpush2.msra.mxu0 0.0
    %1306 = vmatprep.subr.mxu0 0.0
    %1307 = vmatpush2.msra.mxu0 0.0
    %1308 = vmatprep.subr.mxu0 0.0
    %1309 = vmatpush2.msra.mxu0 0.0
    %1310 = vmatprep.subr.mxu0 0.0
    %1311 = vmatpush2.msra.mxu0 0.0
    %1312 = vmatprep.subr.mxu0 0.0
    %1313 = vmatpush2.msra.mxu0 0.0
    %1314 = vmatprep.subr.mxu0 0.0
    %1315 = vmatpush2.msra.mxu0 0.0
    %1316 = vmatprep.subr.mxu0 0.0
    %1317 = vmatpush2.msra.mxu0 0.0
    %1318 = vmatprep.subr.mxu0 0.0
    %1319 = vmatpush2.msra.mxu0 0.0
    %1320 = vmatprep.subr.mxu0 0.0
    %1321 = vmatpush2.msra.mxu0 0.0
    %1322 = vmatprep.subr.mxu0 0.0
    %1323 = vmatpush2.msra.mxu0 0.0
    %1324 = vmatprep.subr.mxu0 0.0
    %1325 = vmatpush2.msra.mxu0 0.0
    %1326 = vmatprep.mubr.f32.mxu0 0.0
    %1327 = vmatmul.mubr.f32.gmra.mxu0 %v1251
    %v1328 = vpop.f32.mrf.mxu0
    %v1329 = vadd.f32 0.0, %v1328
    %v1330 = vpop.f32.mrf.mxu0
    %1331 = vmatprep.mubr.f32.mxu0 0.0
    %1332 = vmatmul.mubr.f32.gmra.mxu0 %v1254
    %v1333 = vpop.f32.mrf.mxu0
    %v1334 = vadd.f32 0.0, %v1333
    %v1335 = vpop.f32.mrf.mxu0
    %1336 = vmatprep.mubr.f32.mxu0 0.0
    %1337 = vmatmul.mubr.f32.gmra.mxu0 %v1257
    %v1338 = vpop.f32.mrf.mxu0
    %v1339 = vadd.f32 0.0, %v1338
    %v1340 = vpop.f32.mrf.mxu0
    %1341 = vmatprep.mubr.f32.mxu0 0.0
    %1342 = vmatmul.mubr.f32.gmra.mxu0 %v1260
    %v1343 = vpop.f32.mrf.mxu0
    %v1344 = vadd.f32 0.0, %v1343
    %v1345 = vpop.f32.mrf.mxu0
    %1346 = vdwg.mxu0
    %v1348 = vlaneseq
    %v1349 = vshrl.u32 %v1348, 7
    %v1350 = vsub.s32 0, %v1349
    %v1351 = vrot.slane %v1238, %v1350
    %v1353 = vmul.f32 %v1049, %v1351
    %v1354 = vmul.f32 %v1050, %v1351
    %v1355 = vmul.f32 %v1051, %v1351
    %v1356 = vmul.f32 %v1052, %v1351
    %v1358 = vlaneseq
    %v1359 = vshrl.u32 %v1358, 7
    %v1360 = vsub.s32 0, %v1359
    %v1361 = vrot.slane %v1241, %v1360
    %v1363 = vadd.f32 %v1353, %v1361
    %v1364 = vadd.f32 %v1354, %v1361
    %v1365 = vadd.f32 %v1355, %v1361
    %v1366 = vadd.f32 %v1356, %v1361
    %v1367 = vadd.f32 %v1363, %v1329
    %v1368 = vadd.f32 %v1364, %v1334
    %v1369 = vadd.f32 %v1365, %v1339
    %v1370 = vadd.f32 %v1366, %v1344
    %v1371 = vmax.f32 %v1367, 0.0
    %v1372 = vmax.f32 %v1368, 0.0
    %v1373 = vmax.f32 %v1369, 0.0
    %v1374 = vmax.f32 %v1370, 0.0
    %1375 = vst [vmem:[#allocation11] sm:$0xff] %v1371
    %1376 = vst [vmem:[#allocation11 + $0x8] sm:$0xff] %v1372
    %1377 = vst [vmem:[#allocation11 + $0x10] sm:$0xff] %v1373
    %1378 = vst [vmem:[#allocation11 + $0x18] sm:$0xff] %v1374
    // Predicated region
    $region70: #{tpu_custom_call.1} parent=1 // pred_check
      _
    $region71: #{tpu_custom_call.1} parent=1 // pred_check_branch
      %1380 = sbr.rel (0) target = $region73
    $region72: #{tpu_custom_call.1} parent=1 // pred_region
      %s1382 = ssub.s32 512, 512
      %1383 = vsyncadd [#allocation4], %s1382
      %s1384 = sshll.u32 [#allocation11], 4
      %s1385 = int_to_ptr.vmem [resolvable:$true] %s1384
      %1390 = dma.vmem_to_hbm [thread:$0]  %s1385, 512, %s12, [#allocation4], 128, 128, 8
    $region73: #{tpu_custom_call.1} parent=1 // pred_fallthru
      _
    // Predicated region
    $region74: #{tpu_custom_call.1} parent=1 // pred_check
      _
    $region75: #{tpu_custom_call.1} parent=1 // pred_check_branch
      %1392 = sbr.rel (0) target = $region77
    $region76: #{tpu_custom_call.1} parent=1 // pred_region
      %1393 = dma.done [#allocation4], 512
    $region77: #{tpu_custom_call.1} parent=1 // pred_fallthru
      _
    %1394 = vsyncpa [#allocation3], 1
    %1395 = vsyncpa [#allocation6], 1
    %1396 = vsyncpa [#allocation9], 1
    %1397 = vsyncpa [#allocation4], 1

</llo_original>
